<compile_context>
chip_gen: v6e
topology: v6e:2x2x1
jax: 0.10.0
libtpu: 0.0.40
codegen_flags: <defaults>
</compile_context>

<pallas_src>
import math

import jax
import jax.numpy as jnp
from jax import lax
from jax.experimental import pallas as pl
from jax.experimental.pallas import tpu as pltpu

# sigmoid gates first (one contiguous slab), tanh gate last
_GATES = ("i", "f", "o", "g")


def _round_up(n, m):
    return (n + m - 1) // m * m


def _pack_gate_weights(params, hidden, hp, input_size):
    """Fuse the 4 input / 4 recurrent gate matrices and the gate biases.

    Returns:
      w_x_aug: (input_size + 1, 4*hp) f32 — the gate biases live in the last
               row (the wrapper appends a constant-1 feature column to x).
      w_h:     (hp, 4*hp) bf16 fused recurrent weights, zero padded.
    Gate column order: i, f, o, g (sigmoid | sigmoid | sigmoid | tanh).
    Padded rows/columns are exactly zero, which keeps the padded hidden lanes
    of h/c at zero throughout the recurrence.
    """
    w_x = jnp.zeros((input_size + 1, 4 * hp), jnp.float32)
    w_h = jnp.zeros((hp, 4 * hp), jnp.float32)
    for k, g in enumerate(_GATES):
        c0 = k * hp
        w_x = w_x.at[:input_size, c0:c0 + hidden].set(params[f"W_i{g}"])
        w_x = w_x.at[input_size, c0:c0 + hidden].set(params[f"b_i{g}"])
        w_h = w_h.at[:hidden, c0:c0 + hidden].set(params[f"W_h{g}"])
    return w_x, w_h.astype(jnp.bfloat16)


def custom_lstm_forward(x, params, *, t_chunk=64):
    """x: (batch, seq_len, input_size) f32 -> (batch, categories) f32."""
    batch, seq_len, input_size = x.shape
    hidden = params["W_ii"].shape[1]

    bp = _round_up(batch, 8)            # sublane-pad batch
    hp = _round_up(hidden, 128)         # lane-pad hidden -> aligned gate slices

    # v7x: split the batch across the two TensorCores when there is enough of it
    nb = 2 if bp >= 16 else 1
    if nb == 2:
        bp = _round_up(bp, 16)
    bb = bp // nb

    tc = max(1, min(t_chunk, seq_len))  # timesteps per grid step
    seq_pad = _round_up(seq_len, tc)    # prefer tc | seq_len -> no time mask
    needs_time_mask = seq_pad != seq_len

    w_x, w_h = _pack_gate_weights(params, hidden, hp, input_size)
    ia = input_size + 1                 # +1 constant feature carrying the bias

    # Time-major, batch-padded x with a constant-1 column (folds the biases
    # into the in-kernel x-projection).  This is the only streamed activation.
    x_tm = jnp.zeros((seq_pad, bp, input_size), jnp.float32)
    x_tm = x_tm.at[:seq_len, :batch].set(jnp.transpose(x, (1, 0, 2)))
    x_aug = jnp.concatenate(
        [x_tm, jnp.ones((seq_pad, bp, 1), jnp.float32)], axis=-1)

    unroll = min(tc, 8)   # bounded unroll: keeps vreg pressure off the serial path

    def kernel(x_ref, wx_ref, wh_ref, h_out_ref, h_sc, c_sc):
        t = pl.program_id(1)

        @pl.when(t == 0)
        def _():
            h_sc[...] = jnp.zeros_like(h_sc)
            c_sc[...] = jnp.zeros_like(c_sc)

        wx_v = wx_ref[...]              # (ia, 4*hp) f32, hoisted out of the loop
        wh_v = wh_ref[...]              # (hp, 4*hp) bf16, hoisted out of the loop
        t0 = t * tc

        def step(tl, carry):
            h, c = carry
            x_t = x_ref[tl]             # (bb, ia)
            # input projection (+bias via the ones column) + one fused
            # recurrent MXU matmul; f32 accumulation.
            z = (jnp.dot(x_t, wx_v, preferred_element_type=jnp.float32)
                 + jnp.dot(h.astype(jnp.bfloat16), wh_v,
                           preferred_element_type=jnp.float32))
            sig = jax.nn.sigmoid(z[:, :3 * hp])     # i | f | o in one slab
            i_t = sig[:, 0 * hp:1 * hp]
            f_t = sig[:, 1 * hp:2 * hp]
            o_t = sig[:, 2 * hp:3 * hp]
            g_t = jnp.tanh(z[:, 3 * hp:4 * hp])
            c_new = f_t * c + i_t * g_t
            h_new = o_t * jnp.tanh(c_new)
            if needs_time_mask:         # only compiled in when seq is ragged
                valid = (t0 + tl) < seq_len
                h_new = jnp.where(valid, h_new, h)
                c_new = jnp.where(valid, c_new, c)
            return h_new, c_new

        h, c = lax.fori_loop(0, tc, step, (h_sc[...], c_sc[...]),
                             unroll=unroll)
        h_sc[...] = h
        c_sc[...] = c

        @pl.when(t == pl.num_programs(1) - 1)
        def _():
            h_out_ref[...] = h          # single lane-dense store at the end

    # Explicit VMEM budget (holds on v7x's 64 MiB physical VMEM as well).
    vmem_need = (
        2 * tc * bb * ia * 4            # x chunk, double buffered
        + 2 * ia * 4 * hp * 4           # w_x (f32)
        + 1 * hp * 4 * hp * 2           # w_h (bf16, single buffered)
        + 2 * bb * hp * 4               # output block
        + 2 * bb * hp * 4               # h / c scratch
    )
    vmem_limit = min(int(vmem_need * 1.5) + (8 << 20), 64 << 20)

    grid_spec = pltpu.PrefetchScalarGridSpec(
        num_scalar_prefetch=0,
        grid=(nb, seq_pad // tc),
        in_specs=[
            # chunk of raw inputs for tc timesteps of this batch block
            pl.BlockSpec((tc, bb, ia), lambda b, t: (t, b, 0)),
            # fused input-projection weights (+ biases), constant across grid
            pl.BlockSpec((ia, 4 * hp), lambda b, t: (0, 0)),
            # fused recurrent weights: grid-invariant -> single buffer
            pl.BlockSpec((hp, 4 * hp), lambda b, t: (0, 0),
                         pipeline_mode=pl.Buffered(1)),
        ],
        out_specs=pl.BlockSpec((bb, hp), lambda b, t: (b, 0)),
        scratch_shapes=[
            pltpu.VMEM((bb, hp), jnp.float32),   # h state
            pltpu.VMEM((bb, hp), jnp.float32),   # c state
        ],
    )

    h_last_pad = pl.pallas_call(
        kernel,
        out_shape=jax.ShapeDtypeStruct((bp, hp), jnp.float32),
        grid_spec=grid_spec,
        compiler_params=pltpu.CompilerParams(
            # batch axis parallel (v7x 2 TCs), time axis serial recurrence
            dimension_semantics=("parallel", "arbitrary"),
            vmem_limit_bytes=vmem_limit),
    )(x_aug, w_x, w_h)

    h_last = h_last_pad[:batch, :hidden]
    # final projection outside the kernel (used once; keeps W_out out of VMEM)
    return h_last @ params["W_out"] + params["b_out"]


def init_params(key, input_size, hidden_size, categories):
    """Matches the PyTorch init: U(-1/sqrt(H), 1/sqrt(H)) then b_if = 1."""
    stdv = 1.0 / math.sqrt(hidden_size)
    shapes = {
        "W_ii": (input_size, hidden_size), "W_hi": (hidden_size, hidden_size),
        "b_ii": (hidden_size,),
        "W_if": (input_size, hidden_size), "W_hf": (hidden_size, hidden_size),
        "b_if": (hidden_size,),
        "W_ig": (input_size, hidden_size), "W_hg": (hidden_size, hidden_size),
        "b_ig": (hidden_size,),
        "W_io": (input_size, hidden_size), "W_ho": (hidden_size, hidden_size),
        "b_io": (hidden_size,),
        "W_out": (hidden_size, categories), "b_out": (categories,),
    }
    keys = jax.random.split(key, len(shapes))
    p = {name: jax.random.uniform(k, shp, jnp.float32, -stdv, stdv)
         for (name, shp), k in zip(shapes.items(), keys)}
    p["b_if"] = jnp.ones((hidden_size,), jnp.float32)   # torch constant_(b_if, 1)
    return p


def reference_forward(x, params):
    """Pure-JAX reference mirroring the PyTorch loop."""
    batch, seq_len, _ = x.shape
    hidden = params["W_ii"].shape[1]
    h = jnp.zeros((batch, hidden), jnp.float32)
    c = jnp.zeros((batch, hidden), jnp.float32)
    for t in range(seq_len):
        x_t = x[:, t, :]
        i_t = jax.nn.sigmoid(x_t @ params["W_ii"] + h @ params["W_hi"] + params["b_ii"])
        f_t = jax.nn.sigmoid(x_t @ params["W_if"] + h @ params["W_hf"] + params["b_if"])
        g_t = jnp.tanh(x_t @ params["W_ig"] + h @ params["W_hg"] + params["b_ig"])
        o_t = jax.nn.sigmoid(x_t @ params["W_io"] + h @ params["W_ho"] + params["b_io"])
        c = f_t * c + i_t * g_t
        h = o_t * jnp.tanh(c)
    return h @ params["W_out"] + params["b_out"]


if __name__ == "__main__":
    batch, seq_len, input_size, hidden_size, categories = 2, 8, 16, 32, 8

    key = jax.random.PRNGKey(0)
    k_x, k_p = jax.random.split(key)
    x = jax.random.normal(k_x, (batch, seq_len, input_size), jnp.float32)
    params = init_params(k_p, input_size, hidden_size, categories)

    fwd = jax.jit(custom_lstm_forward)
    out = jax.block_until_ready(fwd(x, params))

    ref = reference_forward(x, params)
    assert out.shape == (batch, categories)
    # bf16 recurrent-weight matmul (f32 accumulation) -> slightly looser tol
    assert jnp.allclose(out, ref, atol=1e-2, rtol=1e-2), (out, ref)

    print("KERNEL_OK")
</pallas_src>

<mosaic_0001>
module attributes {stable_mosaic.version = 11 : i64} {
  func.func @kernel(%arg0: i32, %arg1: i32, %arg2: memref<8x8x17xf32, #tpu.memory_space<vmem>>, %arg3: memref<17x512xf32, #tpu.memory_space<vmem>>, %arg4: memref<128x512xbf16, #tpu.memory_space<vmem>>, %arg5: memref<8x128xf32, #tpu.memory_space<vmem>>, %arg6: memref<8x128xf32, #tpu.memory_space<vmem>>, %arg7: memref<8x128xf32, #tpu.memory_space<vmem>>) attributes {dimension_semantics = [#tpu.dimension_semantics<parallel>, #tpu.dimension_semantics<arbitrary>], iteration_bounds = array<i64: 1, 1>, scalar_prefetch = 0 : i64, scratch_operands = 2 : i64, tpu.core_type = #tpu.core_type<tc>, window_params = [{transform_indices = @transform_0, window_bounds = array<i64: 8, 8, 17>}, {pipeline_mode = #tpu.pipeline_mode<synchronous>, transform_indices = @transform_1, window_bounds = array<i64: 17, 512>}, {pipeline_mode = #tpu.pipeline_mode<synchronous>, transform_indices = @transform_2, window_bounds = array<i64: 128, 512>}, {transform_indices = @transform_3, window_bounds = array<i64: 8, 128>}]} {
    %c0_i32 = arith.constant 0 : i32
    %0 = arith.cmpi eq, %arg1, %c0_i32 : i32
    %1 = arith.extui %0 : i1 to i32
    %c0_i32_0 = arith.constant 0 : i32
    %2 = arith.cmpi ne, %1, %c0_i32_0 : i32
    scf.if %2 {
      %cst_54 = arith.constant 0.000000e+00 : f32
      %196 = vector.broadcast %cst_54 : f32 to vector<8x128xf32>
      %c0_55 = arith.constant 0 : index
      %c0_56 = arith.constant 0 : index
      %197 = vector.load %arg6[%c0_55, %c0_56] : memref<8x128xf32, #tpu.memory_space<vmem>>, vector<8x128xf32>
      tpu.vector_store %arg6[%c0_55, %c0_56], %196 {strides = array<i32>} : memref<8x128xf32, #tpu.memory_space<vmem>>, vector<8x128xf32>,
      %cst_57 = arith.constant 0.000000e+00 : f32
      %198 = vector.broadcast %cst_57 : f32 to vector<8x128xf32>
      %c0_58 = arith.constant 0 : index
      %c0_59 = arith.constant 0 : index
      %199 = vector.load %arg7[%c0_58, %c0_59] : memref<8x128xf32, #tpu.memory_space<vmem>>, vector<8x128xf32>
      tpu.vector_store %arg7[%c0_58, %c0_59], %198 {strides = array<i32>} : memref<8x128xf32, #tpu.memory_space<vmem>>, vector<8x128xf32>,
    } else {
    }
    %c0 = arith.constant 0 : index
    %c0_1 = arith.constant 0 : index
    %3 = vector.load %arg3[%c0, %c0_1] : memref<17x512xf32, #tpu.memory_space<vmem>>, vector<17x512xf32>
    %c0_2 = arith.constant 0 : index
    %c0_3 = arith.constant 0 : index
    %4 = vector.load %arg4[%c0_2, %c0_3] : memref<128x512xbf16, #tpu.memory_space<vmem>>, vector<128x512xbf16>
    %c0_4 = arith.constant 0 : index
    %c0_5 = arith.constant 0 : index
    %5 = vector.load %arg6[%c0_4, %c0_5] : memref<8x128xf32, #tpu.memory_space<vmem>>, vector<8x128xf32>
    %c0_6 = arith.constant 0 : index
    %c0_7 = arith.constant 0 : index
    %6 = vector.load %arg7[%c0_6, %c0_7] : memref<8x128xf32, #tpu.memory_space<vmem>>, vector<8x128xf32>
    %c0_i32_8 = arith.constant 0 : i32
    %7 = arith.index_cast %c0_i32_8 : i32 to index
    %c0_9 = arith.constant 0 : index
    %c0_10 = arith.constant 0 : index
    %8 = vector.load %arg2[%7, %c0_9, %c0_10] : memref<8x8x17xf32, #tpu.memory_space<vmem>>, vector<1x8x17xf32>
    %9 = vector.shape_cast %8 : vector<1x8x17xf32> to vector<8x17xf32>
    %cst = arith.constant dense<0.000000e+00> : vector<8x512xf32>
    %10 = tpu.matmul %9, %3, %cst {dimension_numbers = #tpu.dot_dimension_numbers<[1], [0], [0], [1], [0, 0, 1, 1], [], []>} : vector<8x17xf32>, vector<17x512xf32>, vector<8x512xf32> -> vector<8x512xf32>
    %11 = arith.truncf %5 : vector<8x128xf32> to vector<8x128xbf16>
    %cst_11 = arith.constant dense<0.000000e+00> : vector<8x512xf32>
    %12 = tpu.matmul %11, %4, %cst_11 {dimension_numbers = #tpu.dot_dimension_numbers<[1], [0], [0], [1], [0, 0, 1, 1], [], []>} : vector<8x128xbf16>, vector<128x512xbf16>, vector<8x512xf32> -> vector<8x512xf32>
    %13 = arith.addf %10, %12 : vector<8x512xf32>
    %14 = vector.extract_strided_slice %13 {offsets = [0, 0], sizes = [8, 384], strides = [1, 1]} : vector<8x512xf32> to vector<8x384xf32>
    %15 = arith.negf %14 : vector<8x384xf32>
    %16 = math.exp %15 : vector<8x384xf32>
    %cst_12 = arith.constant 1.000000e+00 : f32
    %17 = vector.broadcast %cst_12 : f32 to vector<8x384xf32>
    %18 = arith.addf %17, %16 : vector<8x384xf32>
    %19 = arith.divf %17, %18 : vector<8x384xf32>
    %20 = vector.extract_strided_slice %19 {offsets = [0, 0], sizes = [8, 128], strides = [1, 1]} : vector<8x384xf32> to vector<8x128xf32>
    %21 = vector.extract_strided_slice %19 {offsets = [0, 128], sizes = [8, 128], strides = [1, 1]} : vector<8x384xf32> to vector<8x128xf32>
    %22 = vector.extract_strided_slice %19 {offsets = [0, 256], sizes = [8, 128], strides = [1, 1]} : vector<8x384xf32> to vector<8x128xf32>
    %23 = vector.extract_strided_slice %13 {offsets = [0, 384], sizes = [8, 128], strides = [1, 1]} : vector<8x512xf32> to vector<8x128xf32>
    %24 = math.tanh %23 : vector<8x128xf32>
    %25 = arith.mulf %21, %6 : vector<8x128xf32>
    %26 = arith.mulf %20, %24 : vector<8x128xf32>
    %27 = arith.addf %25, %26 : vector<8x128xf32>
    %28 = math.tanh %27 : vector<8x128xf32>
    %29 = arith.mulf %22, %28 : vector<8x128xf32>
    %c1_i32 = arith.constant 1 : i32
    %30 = arith.index_cast %c1_i32 : i32 to index
    %c0_13 = arith.constant 0 : index
    %c0_14 = arith.constant 0 : index
    %31 = vector.load %arg2[%30, %c0_13, %c0_14] : memref<8x8x17xf32, #tpu.memory_space<vmem>>, vector<1x8x17xf32>
    %32 = vector.shape_cast %31 : vector<1x8x17xf32> to vector<8x17xf32>
    %cst_15 = arith.constant dense<0.000000e+00> : vector<8x512xf32>
    %33 = tpu.matmul %32, %3, %cst_15 {dimension_numbers = #tpu.dot_dimension_numbers<[1], [0], [0], [1], [0, 0, 1, 1], [], []>} : vector<8x17xf32>, vector<17x512xf32>, vector<8x512xf32> -> vector<8x512xf32>
    %34 = arith.truncf %29 : vector<8x128xf32> to vector<8x128xbf16>
    %cst_16 = arith.constant dense<0.000000e+00> : vector<8x512xf32>
    %35 = tpu.matmul %34, %4, %cst_16 {dimension_numbers = #tpu.dot_dimension_numbers<[1], [0], [0], [1], [0, 0, 1, 1], [], []>} : vector<8x128xbf16>, vector<128x512xbf16>, vector<8x512xf32> -> vector<8x512xf32>
    %36 = arith.addf %33, %35 : vector<8x512xf32>
    %37 = vector.extract_strided_slice %36 {offsets = [0, 0], sizes = [8, 384], strides = [1, 1]} : vector<8x512xf32> to vector<8x384xf32>
    %38 = arith.negf %37 : vector<8x384xf32>
    %39 = math.exp %38 : vector<8x384xf32>
    %cst_17 = arith.constant 1.000000e+00 : f32
    %40 = vector.broadcast %cst_17 : f32 to vector<8x384xf32>
    %41 = arith.addf %40, %39 : vector<8x384xf32>
    %42 = arith.divf %40, %41 : vector<8x384xf32>
    %43 = vector.extract_strided_slice %42 {offsets = [0, 0], sizes = [8, 128], strides = [1, 1]} : vector<8x384xf32> to vector<8x128xf32>
    %44 = vector.extract_strided_slice %42 {offsets = [0, 128], sizes = [8, 128], strides = [1, 1]} : vector<8x384xf32> to vector<8x128xf32>
    %45 = vector.extract_strided_slice %42 {offsets = [0, 256], sizes = [8, 128], strides = [1, 1]} : vector<8x384xf32> to vector<8x128xf32>
    %46 = vector.extract_strided_slice %36 {offsets = [0, 384], sizes = [8, 128], strides = [1, 1]} : vector<8x512xf32> to vector<8x128xf32>
    %47 = math.tanh %46 : vector<8x128xf32>
    %48 = arith.mulf %44, %27 : vector<8x128xf32>
    %49 = arith.mulf %43, %47 : vector<8x128xf32>
    %50 = arith.addf %48, %49 : vector<8x128xf32>
    %51 = math.tanh %50 : vector<8x128xf32>
    %52 = arith.mulf %45, %51 : vector<8x128xf32>
    %c2_i32 = arith.constant 2 : i32
    %53 = arith.index_cast %c2_i32 : i32 to index
    %c0_18 = arith.constant 0 : index
    %c0_19 = arith.constant 0 : index
    %54 = vector.load %arg2[%53, %c0_18, %c0_19] : memref<8x8x17xf32, #tpu.memory_space<vmem>>, vector<1x8x17xf32>
    %55 = vector.shape_cast %54 : vector<1x8x17xf32> to vector<8x17xf32>
    %cst_20 = arith.constant dense<0.000000e+00> : vector<8x512xf32>
    %56 = tpu.matmul %55, %3, %cst_20 {dimension_numbers = #tpu.dot_dimension_numbers<[1], [0], [0], [1], [0, 0, 1, 1], [], []>} : vector<8x17xf32>, vector<17x512xf32>, vector<8x512xf32> -> vector<8x512xf32>
    %57 = arith.truncf %52 : vector<8x128xf32> to vector<8x128xbf16>
    %cst_21 = arith.constant dense<0.000000e+00> : vector<8x512xf32>
    %58 = tpu.matmul %57, %4, %cst_21 {dimension_numbers = #tpu.dot_dimension_numbers<[1], [0], [0], [1], [0, 0, 1, 1], [], []>} : vector<8x128xbf16>, vector<128x512xbf16>, vector<8x512xf32> -> vector<8x512xf32>
    %59 = arith.addf %56, %58 : vector<8x512xf32>
    %60 = vector.extract_strided_slice %59 {offsets = [0, 0], sizes = [8, 384], strides = [1, 1]} : vector<8x512xf32> to vector<8x384xf32>
    %61 = arith.negf %60 : vector<8x384xf32>
    %62 = math.exp %61 : vector<8x384xf32>
    %cst_22 = arith.constant 1.000000e+00 : f32
    %63 = vector.broadcast %cst_22 : f32 to vector<8x384xf32>
    %64 = arith.addf %63, %62 : vector<8x384xf32>
    %65 = arith.divf %63, %64 : vector<8x384xf32>
    %66 = vector.extract_strided_slice %65 {offsets = [0, 0], sizes = [8, 128], strides = [1, 1]} : vector<8x384xf32> to vector<8x128xf32>
    %67 = vector.extract_strided_slice %65 {offsets = [0, 128], sizes = [8, 128], strides = [1, 1]} : vector<8x384xf32> to vector<8x128xf32>
    %68 = vector.extract_strided_slice %65 {offsets = [0, 256], sizes = [8, 128], strides = [1, 1]} : vector<8x384xf32> to vector<8x128xf32>
    %69 = vector.extract_strided_slice %59 {offsets = [0, 384], sizes = [8, 128], strides = [1, 1]} : vector<8x512xf32> to vector<8x128xf32>
    %70 = math.tanh %69 : vector<8x128xf32>
    %71 = arith.mulf %67, %50 : vector<8x128xf32>
    %72 = arith.mulf %66, %70 : vector<8x128xf32>
    %73 = arith.addf %71, %72 : vector<8x128xf32>
    %74 = math.tanh %73 : vector<8x128xf32>
    %75 = arith.mulf %68, %74 : vector<8x128xf32>
    %c3_i32 = arith.constant 3 : i32
    %76 = arith.index_cast %c3_i32 : i32 to index
    %c0_23 = arith.constant 0 : index
    %c0_24 = arith.constant 0 : index
    %77 = vector.load %arg2[%76, %c0_23, %c0_24] : memref<8x8x17xf32, #tpu.memory_space<vmem>>, vector<1x8x17xf32>
    %78 = vector.shape_cast %77 : vector<1x8x17xf32> to vector<8x17xf32>
    %cst_25 = arith.constant dense<0.000000e+00> : vector<8x512xf32>
    %79 = tpu.matmul %78, %3, %cst_25 {dimension_numbers = #tpu.dot_dimension_numbers<[1], [0], [0], [1], [0, 0, 1, 1], [], []>} : vector<8x17xf32>, vector<17x512xf32>, vector<8x512xf32> -> vector<8x512xf32>
    %80 = arith.truncf %75 : vector<8x128xf32> to vector<8x128xbf16>
    %cst_26 = arith.constant dense<0.000000e+00> : vector<8x512xf32>
    %81 = tpu.matmul %80, %4, %cst_26 {dimension_numbers = #tpu.dot_dimension_numbers<[1], [0], [0], [1], [0, 0, 1, 1], [], []>} : vector<8x128xbf16>, vector<128x512xbf16>, vector<8x512xf32> -> vector<8x512xf32>
    %82 = arith.addf %79, %81 : vector<8x512xf32>
    %83 = vector.extract_strided_slice %82 {offsets = [0, 0], sizes = [8, 384], strides = [1, 1]} : vector<8x512xf32> to vector<8x384xf32>
    %84 = arith.negf %83 : vector<8x384xf32>
    %85 = math.exp %84 : vector<8x384xf32>
    %cst_27 = arith.constant 1.000000e+00 : f32
    %86 = vector.broadcast %cst_27 : f32 to vector<8x384xf32>
    %87 = arith.addf %86, %85 : vector<8x384xf32>
    %88 = arith.divf %86, %87 : vector<8x384xf32>
    %89 = vector.extract_strided_slice %88 {offsets = [0, 0], sizes = [8, 128], strides = [1, 1]} : vector<8x384xf32> to vector<8x128xf32>
    %90 = vector.extract_strided_slice %88 {offsets = [0, 128], sizes = [8, 128], strides = [1, 1]} : vector<8x384xf32> to vector<8x128xf32>
    %91 = vector.extract_strided_slice %88 {offsets = [0, 256], sizes = [8, 128], strides = [1, 1]} : vector<8x384xf32> to vector<8x128xf32>
    %92 = vector.extract_strided_slice %82 {offsets = [0, 384], sizes = [8, 128], strides = [1, 1]} : vector<8x512xf32> to vector<8x128xf32>
    %93 = math.tanh %92 : vector<8x128xf32>
    %94 = arith.mulf %90, %73 : vector<8x128xf32>
    %95 = arith.mulf %89, %93 : vector<8x128xf32>
    %96 = arith.addf %94, %95 : vector<8x128xf32>
    %97 = math.tanh %96 : vector<8x128xf32>
    %98 = arith.mulf %91, %97 : vector<8x128xf32>
    %c4_i32 = arith.constant 4 : i32
    %99 = arith.index_cast %c4_i32 : i32 to index
    %c0_28 = arith.constant 0 : index
    %c0_29 = arith.constant 0 : index
    %100 = vector.load %arg2[%99, %c0_28, %c0_29] : memref<8x8x17xf32, #tpu.memory_space<vmem>>, vector<1x8x17xf32>
    %101 = vector.shape_cast %100 : vector<1x8x17xf32> to vector<8x17xf32>
    %cst_30 = arith.constant dense<0.000000e+00> : vector<8x512xf32>
    %102 = tpu.matmul %101, %3, %cst_30 {dimension_numbers = #tpu.dot_dimension_numbers<[1], [0], [0], [1], [0, 0, 1, 1], [], []>} : vector<8x17xf32>, vector<17x512xf32>, vector<8x512xf32> -> vector<8x512xf32>
    %103 = arith.truncf %98 : vector<8x128xf32> to vector<8x128xbf16>
    %cst_31 = arith.constant dense<0.000000e+00> : vector<8x512xf32>
    %104 = tpu.matmul %103, %4, %cst_31 {dimension_numbers = #tpu.dot_dimension_numbers<[1], [0], [0], [1], [0, 0, 1, 1], [], []>} : vector<8x128xbf16>, vector<128x512xbf16>, vector<8x512xf32> -> vector<8x512xf32>
    %105 = arith.addf %102, %104 : vector<8x512xf32>
    %106 = vector.extract_strided_slice %105 {offsets = [0, 0], sizes = [8, 384], strides = [1, 1]} : vector<8x512xf32> to vector<8x384xf32>
    %107 = arith.negf %106 : vector<8x384xf32>
    %108 = math.exp %107 : vector<8x384xf32>
    %cst_32 = arith.constant 1.000000e+00 : f32
    %109 = vector.broadcast %cst_32 : f32 to vector<8x384xf32>
    %110 = arith.addf %109, %108 : vector<8x384xf32>
    %111 = arith.divf %109, %110 : vector<8x384xf32>
    %112 = vector.extract_strided_slice %111 {offsets = [0, 0], sizes = [8, 128], strides = [1, 1]} : vector<8x384xf32> to vector<8x128xf32>
    %113 = vector.extract_strided_slice %111 {offsets = [0, 128], sizes = [8, 128], strides = [1, 1]} : vector<8x384xf32> to vector<8x128xf32>
    %114 = vector.extract_strided_slice %111 {offsets = [0, 256], sizes = [8, 128], strides = [1, 1]} : vector<8x384xf32> to vector<8x128xf32>
    %115 = vector.extract_strided_slice %105 {offsets = [0, 384], sizes = [8, 128], strides = [1, 1]} : vector<8x512xf32> to vector<8x128xf32>
    %116 = math.tanh %115 : vector<8x128xf32>
    %117 = arith.mulf %113, %96 : vector<8x128xf32>
    %118 = arith.mulf %112, %116 : vector<8x128xf32>
    %119 = arith.addf %117, %118 : vector<8x128xf32>
    %120 = math.tanh %119 : vector<8x128xf32>
    %121 = arith.mulf %114, %120 : vector<8x128xf32>
    %c5_i32 = arith.constant 5 : i32
    %122 = arith.index_cast %c5_i32 : i32 to index
    %c0_33 = arith.constant 0 : index
    %c0_34 = arith.constant 0 : index
    %123 = vector.load %arg2[%122, %c0_33, %c0_34] : memref<8x8x17xf32, #tpu.memory_space<vmem>>, vector<1x8x17xf32>
    %124 = vector.shape_cast %123 : vector<1x8x17xf32> to vector<8x17xf32>
    %cst_35 = arith.constant dense<0.000000e+00> : vector<8x512xf32>
    %125 = tpu.matmul %124, %3, %cst_35 {dimension_numbers = #tpu.dot_dimension_numbers<[1], [0], [0], [1], [0, 0, 1, 1], [], []>} : vector<8x17xf32>, vector<17x512xf32>, vector<8x512xf32> -> vector<8x512xf32>
    %126 = arith.truncf %121 : vector<8x128xf32> to vector<8x128xbf16>
    %cst_36 = arith.constant dense<0.000000e+00> : vector<8x512xf32>
    %127 = tpu.matmul %126, %4, %cst_36 {dimension_numbers = #tpu.dot_dimension_numbers<[1], [0], [0], [1], [0, 0, 1, 1], [], []>} : vector<8x128xbf16>, vector<128x512xbf16>, vector<8x512xf32> -> vector<8x512xf32>
    %128 = arith.addf %125, %127 : vector<8x512xf32>
    %129 = vector.extract_strided_slice %128 {offsets = [0, 0], sizes = [8, 384], strides = [1, 1]} : vector<8x512xf32> to vector<8x384xf32>
    %130 = arith.negf %129 : vector<8x384xf32>
    %131 = math.exp %130 : vector<8x384xf32>
    %cst_37 = arith.constant 1.000000e+00 : f32
    %132 = vector.broadcast %cst_37 : f32 to vector<8x384xf32>
    %133 = arith.addf %132, %131 : vector<8x384xf32>
    %134 = arith.divf %132, %133 : vector<8x384xf32>
    %135 = vector.extract_strided_slice %134 {offsets = [0, 0], sizes = [8, 128], strides = [1, 1]} : vector<8x384xf32> to vector<8x128xf32>
    %136 = vector.extract_strided_slice %134 {offsets = [0, 128], sizes = [8, 128], strides = [1, 1]} : vector<8x384xf32> to vector<8x128xf32>
    %137 = vector.extract_strided_slice %134 {offsets = [0, 256], sizes = [8, 128], strides = [1, 1]} : vector<8x384xf32> to vector<8x128xf32>
    %138 = vector.extract_strided_slice %128 {offsets = [0, 384], sizes = [8, 128], strides = [1, 1]} : vector<8x512xf32> to vector<8x128xf32>
    %139 = math.tanh %138 : vector<8x128xf32>
    %140 = arith.mulf %136, %119 : vector<8x128xf32>
    %141 = arith.mulf %135, %139 : vector<8x128xf32>
    %142 = arith.addf %140, %141 : vector<8x128xf32>
    %143 = math.tanh %142 : vector<8x128xf32>
    %144 = arith.mulf %137, %143 : vector<8x128xf32>
    %c6_i32 = arith.constant 6 : i32
    %145 = arith.index_cast %c6_i32 : i32 to index
    %c0_38 = arith.constant 0 : index
    %c0_39 = arith.constant 0 : index
    %146 = vector.load %arg2[%145, %c0_38, %c0_39] : memref<8x8x17xf32, #tpu.memory_space<vmem>>, vector<1x8x17xf32>
    %147 = vector.shape_cast %146 : vector<1x8x17xf32> to vector<8x17xf32>
    %cst_40 = arith.constant dense<0.000000e+00> : vector<8x512xf32>
    %148 = tpu.matmul %147, %3, %cst_40 {dimension_numbers = #tpu.dot_dimension_numbers<[1], [0], [0], [1], [0, 0, 1, 1], [], []>} : vector<8x17xf32>, vector<17x512xf32>, vector<8x512xf32> -> vector<8x512xf32>
    %149 = arith.truncf %144 : vector<8x128xf32> to vector<8x128xbf16>
    %cst_41 = arith.constant dense<0.000000e+00> : vector<8x512xf32>
    %150 = tpu.matmul %149, %4, %cst_41 {dimension_numbers = #tpu.dot_dimension_numbers<[1], [0], [0], [1], [0, 0, 1, 1], [], []>} : vector<8x128xbf16>, vector<128x512xbf16>, vector<8x512xf32> -> vector<8x512xf32>
    %151 = arith.addf %148, %150 : vector<8x512xf32>
    %152 = vector.extract_strided_slice %151 {offsets = [0, 0], sizes = [8, 384], strides = [1, 1]} : vector<8x512xf32> to vector<8x384xf32>
    %153 = arith.negf %152 : vector<8x384xf32>
    %154 = math.exp %153 : vector<8x384xf32>
    %cst_42 = arith.constant 1.000000e+00 : f32
    %155 = vector.broadcast %cst_42 : f32 to vector<8x384xf32>
    %156 = arith.addf %155, %154 : vector<8x384xf32>
    %157 = arith.divf %155, %156 : vector<8x384xf32>
    %158 = vector.extract_strided_slice %157 {offsets = [0, 0], sizes = [8, 128], strides = [1, 1]} : vector<8x384xf32> to vector<8x128xf32>
    %159 = vector.extract_strided_slice %157 {offsets = [0, 128], sizes = [8, 128], strides = [1, 1]} : vector<8x384xf32> to vector<8x128xf32>
    %160 = vector.extract_strided_slice %157 {offsets = [0, 256], sizes = [8, 128], strides = [1, 1]} : vector<8x384xf32> to vector<8x128xf32>
    %161 = vector.extract_strided_slice %151 {offsets = [0, 384], sizes = [8, 128], strides = [1, 1]} : vector<8x512xf32> to vector<8x128xf32>
    %162 = math.tanh %161 : vector<8x128xf32>
    %163 = arith.mulf %159, %142 : vector<8x128xf32>
    %164 = arith.mulf %158, %162 : vector<8x128xf32>
    %165 = arith.addf %163, %164 : vector<8x128xf32>
    %166 = math.tanh %165 : vector<8x128xf32>
    %167 = arith.mulf %160, %166 : vector<8x128xf32>
    %c7_i32 = arith.constant 7 : i32
    %168 = arith.index_cast %c7_i32 : i32 to index
    %c0_43 = arith.constant 0 : index
    %c0_44 = arith.constant 0 : index
    %169 = vector.load %arg2[%168, %c0_43, %c0_44] : memref<8x8x17xf32, #tpu.memory_space<vmem>>, vector<1x8x17xf32>
    %170 = vector.shape_cast %169 : vector<1x8x17xf32> to vector<8x17xf32>
    %cst_45 = arith.constant dense<0.000000e+00> : vector<8x512xf32>
    %171 = tpu.matmul %170, %3, %cst_45 {dimension_numbers = #tpu.dot_dimension_numbers<[1], [0], [0], [1], [0, 0, 1, 1], [], []>} : vector<8x17xf32>, vector<17x512xf32>, vector<8x512xf32> -> vector<8x512xf32>
    %172 = arith.truncf %167 : vector<8x128xf32> to vector<8x128xbf16>
    %cst_46 = arith.constant dense<0.000000e+00> : vector<8x512xf32>
    %173 = tpu.matmul %172, %4, %cst_46 {dimension_numbers = #tpu.dot_dimension_numbers<[1], [0], [0], [1], [0, 0, 1, 1], [], []>} : vector<8x128xbf16>, vector<128x512xbf16>, vector<8x512xf32> -> vector<8x512xf32>
    %174 = arith.addf %171, %173 : vector<8x512xf32>
    %175 = vector.extract_strided_slice %174 {offsets = [0, 0], sizes = [8, 384], strides = [1, 1]} : vector<8x512xf32> to vector<8x384xf32>
    %176 = arith.negf %175 : vector<8x384xf32>
    %177 = math.exp %176 : vector<8x384xf32>
    %cst_47 = arith.constant 1.000000e+00 : f32
    %178 = vector.broadcast %cst_47 : f32 to vector<8x384xf32>
    %179 = arith.addf %178, %177 : vector<8x384xf32>
    %180 = arith.divf %178, %179 : vector<8x384xf32>
    %181 = vector.extract_strided_slice %180 {offsets = [0, 0], sizes = [8, 128], strides = [1, 1]} : vector<8x384xf32> to vector<8x128xf32>
    %182 = vector.extract_strided_slice %180 {offsets = [0, 128], sizes = [8, 128], strides = [1, 1]} : vector<8x384xf32> to vector<8x128xf32>
    %183 = vector.extract_strided_slice %180 {offsets = [0, 256], sizes = [8, 128], strides = [1, 1]} : vector<8x384xf32> to vector<8x128xf32>
    %184 = vector.extract_strided_slice %174 {offsets = [0, 384], sizes = [8, 128], strides = [1, 1]} : vector<8x512xf32> to vector<8x128xf32>
    %185 = math.tanh %184 : vector<8x128xf32>
    %186 = arith.mulf %182, %165 : vector<8x128xf32>
    %187 = arith.mulf %181, %185 : vector<8x128xf32>
    %188 = arith.addf %186, %187 : vector<8x128xf32>
    %189 = math.tanh %188 : vector<8x128xf32>
    %190 = arith.mulf %183, %189 : vector<8x128xf32>
    %c8_i32 = arith.constant 8 : i32
    %c0_48 = arith.constant 0 : index
    %c0_49 = arith.constant 0 : index
    %191 = vector.load %arg6[%c0_48, %c0_49] : memref<8x128xf32, #tpu.memory_space<vmem>>, vector<8x128xf32>
    tpu.vector_store %arg6[%c0_48, %c0_49], %190 {strides = array<i32>} : memref<8x128xf32, #tpu.memory_space<vmem>>, vector<8x128xf32>,
    %c0_50 = arith.constant 0 : index
    %c0_51 = arith.constant 0 : index
    %192 = vector.load %arg7[%c0_50, %c0_51] : memref<8x128xf32, #tpu.memory_space<vmem>>, vector<8x128xf32>
    tpu.vector_store %arg7[%c0_50, %c0_51], %188 {strides = array<i32>} : memref<8x128xf32, #tpu.memory_space<vmem>>, vector<8x128xf32>,
    %c0_i32_52 = arith.constant 0 : i32
    %193 = arith.cmpi eq, %arg1, %c0_i32_52 : i32
    %194 = arith.extui %193 : i1 to i32
    %c0_i32_53 = arith.constant 0 : i32
    %195 = arith.cmpi ne, %194, %c0_i32_53 : i32
    scf.if %195 {
      %c0_54 = arith.constant 0 : index
      %c0_55 = arith.constant 0 : index
      %196 = vector.load %arg5[%c0_54, %c0_55] : memref<8x128xf32, #tpu.memory_space<vmem>>, vector<8x128xf32>
      tpu.vector_store %arg5[%c0_54, %c0_55], %190 {strides = array<i32>} : memref<8x128xf32, #tpu.memory_space<vmem>>, vector<8x128xf32>,
    } else {
    }
    return
  }
  func.func @transform_0(%arg0: i32, %arg1: i32) -> (i32, i32, i32) {
    %c0_i32 = arith.constant 0 : i32
    %c0_i32_0 = arith.constant 0 : i32
    return %arg1, %arg0, %c0_i32 : i32, i32, i32
  }
  func.func @transform_1(%arg0: i32, %arg1: i32) -> (i32, i32) {
    %c0_i32 = arith.constant 0 : i32
    %c0_i32_0 = arith.constant 0 : i32
    %c0_i32_1 = arith.constant 0 : i32
    return %c0_i32, %c0_i32_0 : i32, i32
  }
  func.func @transform_2(%arg0: i32, %arg1: i32) -> (i32, i32) {
    %c0_i32 = arith.constant 0 : i32
    %c0_i32_0 = arith.constant 0 : i32
    %c0_i32_1 = arith.constant 0 : i32
    return %c0_i32, %c0_i32_0 : i32, i32
  }
  func.func @transform_3(%arg0: i32, %arg1: i32) -> (i32, i32) {
    %c0_i32 = arith.constant 0 : i32
    %c0_i32_0 = arith.constant 0 : i32
    return %arg0, %c0_i32 : i32, i32
  }
}

</mosaic_0001>

<llo_original>
// kernel: custom_lstm_forward.1
$region0: #{custom_lstm_forward.1}
  #allocation0 [shape = 'u32[]', space=smem, size = 0x4, offset = 0x4, fixed_abs, tag = 'smem constant byte address 0x4 - core index']
  #allocation1 [shape = 'u32[144,128]{1,0:T(1,128)}', space=vmem, size = 0x12000, scoped, tag = 'internal scratch']
  #allocation2 [shape = 'f32[8,128]{1,0:T(8,128)}', space=vmem, size = 0x1000, scoped, tag = 'scratch operand']
  #allocation3 [shape = 'f32[8,128]{1,0:T(8,128)}', space=vmem, size = 0x1000, scoped, tag = 'scratch operand']
  %s0 = inlined_call_operand.vmem [shape: f32[8,8,17], index: 0, kind: input, shape index: {}]
  %s1 = inlined_call_operand.vmem [shape: f32[17,512], index: 1, kind: input, shape index: {}]
  %s2 = inlined_call_operand.vmem [shape: bf16[128,512], index: 2, kind: input, shape index: {}]
  %s3 = inlined_call_operand.vmem [shape: f32[8,128], index: 3, kind: output, shape index: {}]
  %s4 = sld [smem:[#allocation0]]
  $region30: #{custom_lstm_forward.1} parent=0
    _
  %s6 = ssub.s32 1, %s4
  %s7 = scalar_select 0, %s6, %s4
  // Predicated region
  $region2: #{custom_lstm_forward.1} parent=0 // pred_check
    _
  $region3: #{custom_lstm_forward.1} parent=0 // pred_check_branch
    %9 = sbr.rel (0) target = $region5
  $region4: #{custom_lstm_forward.1} parent=0 // pred_region
    _
  $region5: #{custom_lstm_forward.1} parent=0 // pred_fallthru
    _
  // Predicated region
  $region6: #{custom_lstm_forward.1} parent=0 // pred_check
    _
  $region7: #{custom_lstm_forward.1} parent=0 // pred_check_branch
    %11 = sbr.rel (0) target = $region9
  $region8: #{custom_lstm_forward.1} parent=0 // pred_region
    _
  $region9: #{custom_lstm_forward.1} parent=0 // pred_fallthru
    _
  // Predicated region
  $region10: #{custom_lstm_forward.1} parent=0 // pred_check
    _
  $region11: #{custom_lstm_forward.1} parent=0 // pred_check_branch
    %13 = sbr.rel (0) target = $region13
  $region12: #{custom_lstm_forward.1} parent=0 // pred_region
    _
  $region13: #{custom_lstm_forward.1} parent=0 // pred_fallthru
    _
  %p15 = scmp.eq.s32.totalorder 0, 0
  // Predicated region
  $region14: #{custom_lstm_forward.1} parent=0 // pred_check
    %p16 = pneg %p15
  $region15: #{custom_lstm_forward.1} parent=0 // pred_check_branch
    %18 = sbr.rel (%p16) target = $region17
  $region16: #{custom_lstm_forward.1} parent=0 // pred_region
    %19 = vst [vmem:[#allocation2] sm:$0xff] 0.0
    %20 = vst [vmem:[#allocation3] sm:$0xff] 0.0
  $region17: #{custom_lstm_forward.1} parent=0 // pred_fallthru
    _
  %v21 = vld [vmem:[%s1] sm:$0xff]
  %v22 = vld [vmem:[%s1 + $0x8] sm:$0xff]
  %v23 = vld [vmem:[%s1 + $0x10] sm:$0xff]
  %v24 = vld [vmem:[%s1 + $0x18] sm:$0xff]
  %v25 = vld [vmem:[%s1 + $0x20] sm:$0xff]
  %v26 = vld [vmem:[%s1 + $0x28] sm:$0xff]
  %v27 = vld [vmem:[%s1 + $0x30] sm:$0xff]
  %v28 = vld [vmem:[%s1 + $0x38] sm:$0xff]
  %v29 = vld [vmem:[%s1 + $0x40] sm:$0x1]
  %v30 = vld [vmem:[%s1 + $0x48] sm:$0x1]
  %v31 = vld [vmem:[%s1 + $0x50] sm:$0x1]
  %v32 = vld [vmem:[%s1 + $0x58] sm:$0x1]
  %v33 = vld [vmem:[%s2] sm:$0xff]
  %v34 = vld [vmem:[%s2 + $0x8] sm:$0xff]
  %v35 = vld [vmem:[%s2 + $0x10] sm:$0xff]
  %v36 = vld [vmem:[%s2 + $0x18] sm:$0xff]
  %v37 = vld [vmem:[%s2 + $0x20] sm:$0xff]
  %v38 = vld [vmem:[%s2 + $0x28] sm:$0xff]
  %v39 = vld [vmem:[%s2 + $0x30] sm:$0xff]
  %v40 = vld [vmem:[%s2 + $0x38] sm:$0xff]
  %v41 = vld [vmem:[%s2 + $0x40] sm:$0xff]
  %v42 = vld [vmem:[%s2 + $0x48] sm:$0xff]
  %v43 = vld [vmem:[%s2 + $0x50] sm:$0xff]
  %v44 = vld [vmem:[%s2 + $0x58] sm:$0xff]
  %v45 = vld [vmem:[%s2 + $0x60] sm:$0xff]
  %v46 = vld [vmem:[%s2 + $0x68] sm:$0xff]
  %v47 = vld [vmem:[%s2 + $0x70] sm:$0xff]
  %v48 = vld [vmem:[%s2 + $0x78] sm:$0xff]
  %v49 = vld [vmem:[%s2 + $0x80] sm:$0xff]
  %v50 = vld [vmem:[%s2 + $0x88] sm:$0xff]
  %v51 = vld [vmem:[%s2 + $0x90] sm:$0xff]
  %v52 = vld [vmem:[%s2 + $0x98] sm:$0xff]
  %v53 = vld [vmem:[%s2 + $0xa0] sm:$0xff]
  %v54 = vld [vmem:[%s2 + $0xa8] sm:$0xff]
  %v55 = vld [vmem:[%s2 + $0xb0] sm:$0xff]
  %v56 = vld [vmem:[%s2 + $0xb8] sm:$0xff]
  %v57 = vld [vmem:[%s2 + $0xc0] sm:$0xff]
  %v58 = vld [vmem:[%s2 + $0xc8] sm:$0xff]
  %v59 = vld [vmem:[%s2 + $0xd0] sm:$0xff]
  %v60 = vld [vmem:[%s2 + $0xd8] sm:$0xff]
  %v61 = vld [vmem:[%s2 + $0xe0] sm:$0xff]
  %v62 = vld [vmem:[%s2 + $0xe8] sm:$0xff]
  %v63 = vld [vmem:[%s2 + $0xf0] sm:$0xff]
  %v64 = vld [vmem:[%s2 + $0xf8] sm:$0xff]
  %v65 = vld [vmem:[#allocation2] sm:$0xff]
  %v66 = vld [vmem:[#allocation3] sm:$0xff]
  %v67 = vld [vmem:[%s0] sm:$0xff]
  %v68 = vpack.c.bf16 %v65, %v65
  %v101 = vunpack.c.l.b16 %v33
  %v102 = vunpack.c.h.b16 %v33
  %v103 = vunpack.c.l.b16 %v34
  %v104 = vunpack.c.h.b16 %v34
  %v105 = vunpack.c.l.b16 %v35
  %v106 = vunpack.c.h.b16 %v35
  %v107 = vunpack.c.l.b16 %v36
  %v108 = vunpack.c.h.b16 %v36
  %v109 = vunpack.c.l.b16 %v37
  %v110 = vunpack.c.h.b16 %v37
  %v111 = vunpack.c.l.b16 %v38
  %v112 = vunpack.c.h.b16 %v38
  %v113 = vunpack.c.l.b16 %v39
  %v114 = vunpack.c.h.b16 %v39
  %v115 = vunpack.c.l.b16 %v40
  %v116 = vunpack.c.h.b16 %v40
  %v117 = vunpack.c.l.b16 %v41
  %v118 = vunpack.c.h.b16 %v41
  %v119 = vunpack.c.l.b16 %v42
  %v120 = vunpack.c.h.b16 %v42
  %v121 = vunpack.c.l.b16 %v43
  %v122 = vunpack.c.h.b16 %v43
  %v123 = vunpack.c.l.b16 %v44
  %v124 = vunpack.c.h.b16 %v44
  %v125 = vunpack.c.l.b16 %v45
  %v126 = vunpack.c.h.b16 %v45
  %v127 = vunpack.c.l.b16 %v46
  %v128 = vunpack.c.h.b16 %v46
  %v129 = vunpack.c.l.b16 %v47
  %v130 = vunpack.c.h.b16 %v47
  %v131 = vunpack.c.l.b16 %v48
  %v132 = vunpack.c.h.b16 %v48
  %v133 = vunpack.c.l.b16 %v49
  %v134 = vunpack.c.h.b16 %v49
  %v135 = vunpack.c.l.b16 %v50
  %v136 = vunpack.c.h.b16 %v50
  %v137 = vunpack.c.l.b16 %v51
  %v138 = vunpack.c.h.b16 %v51
  %v139 = vunpack.c.l.b16 %v52
  %v140 = vunpack.c.h.b16 %v52
  %v141 = vunpack.c.l.b16 %v53
  %v142 = vunpack.c.h.b16 %v53
  %v143 = vunpack.c.l.b16 %v54
  %v144 = vunpack.c.h.b16 %v54
  %v145 = vunpack.c.l.b16 %v55
  %v146 = vunpack.c.h.b16 %v55
  %v147 = vunpack.c.l.b16 %v56
  %v148 = vunpack.c.h.b16 %v56
  %v149 = vunpack.c.l.b16 %v57
  %v150 = vunpack.c.h.b16 %v57
  %v151 = vunpack.c.l.b16 %v58
  %v152 = vunpack.c.h.b16 %v58
  %v153 = vunpack.c.l.b16 %v59
  %v154 = vunpack.c.h.b16 %v59
  %v155 = vunpack.c.l.b16 %v60
  %v156 = vunpack.c.h.b16 %v60
  %v157 = vunpack.c.l.b16 %v61
  %v158 = vunpack.c.h.b16 %v61
  %v159 = vunpack.c.l.b16 %v62
  %v160 = vunpack.c.h.b16 %v62
  %v161 = vunpack.c.l.b16 %v63
  %v162 = vunpack.c.h.b16 %v63
  %v163 = vunpack.c.l.b16 %v64
  %v164 = vunpack.c.h.b16 %v64
  %v165 = vpack.c.b16 %v105, %v101
  %v166 = vpack.c.b16 %v106, %v102
  %v167 = vpack.c.b16 %v107, %v103
  %v168 = vpack.c.b16 %v108, %v104
  %v169 = vpack.c.b16 %v113, %v109
  %v170 = vpack.c.b16 %v114, %v110
  %v171 = vpack.c.b16 %v115, %v111
  %v172 = vpack.c.b16 %v116, %v112
  %v173 = vpack.c.b16 %v121, %v117
  %v174 = vpack.c.b16 %v122, %v118
  %v175 = vpack.c.b16 %v123, %v119
  %v176 = vpack.c.b16 %v124, %v120
  %v177 = vpack.c.b16 %v129, %v125
  %v178 = vpack.c.b16 %v130, %v126
  %v179 = vpack.c.b16 %v131, %v127
  %v180 = vpack.c.b16 %v132, %v128
  %v181 = vpack.c.b16 %v137, %v133
  %v182 = vpack.c.b16 %v138, %v134
  %v183 = vpack.c.b16 %v139, %v135
  %v184 = vpack.c.b16 %v140, %v136
  %v185 = vpack.c.b16 %v145, %v141
  %v186 = vpack.c.b16 %v146, %v142
  %v187 = vpack.c.b16 %v147, %v143
  %v188 = vpack.c.b16 %v148, %v144
  %v189 = vpack.c.b16 %v153, %v149
  %v190 = vpack.c.b16 %v154, %v150
  %v191 = vpack.c.b16 %v155, %v151
  %v192 = vpack.c.b16 %v156, %v152
  %v193 = vpack.c.b16 %v161, %v157
  %v194 = vpack.c.b16 %v162, %v158
  %v195 = vpack.c.b16 %v163, %v159
  %v196 = vpack.c.b16 %v164, %v160
  %229 = vmatprep.subr.bf16.mxu0 %v194
  %230 = vmatpush1.bf16.msra.mxu0 %v193
  %231 = vmatprep.subr.bf16.mxu0 %v190
  %232 = vmatpush1.bf16.msra.mxu0 %v189
  %233 = vmatprep.subr.bf16.mxu0 %v186
  %234 = vmatpush1.bf16.msra.mxu0 %v185
  %235 = vmatprep.subr.bf16.mxu0 %v182
  %236 = vmatpush1.bf16.msra.mxu0 %v181
  %237 = vmatprep.subr.bf16.mxu0 %v178
  %238 = vmatpush1.bf16.msra.mxu0 %v177
  %239 = vmatprep.subr.bf16.mxu0 %v174
  %240 = vmatpush1.bf16.msra.mxu0 %v173
  %241 = vmatprep.subr.bf16.mxu0 %v170
  %242 = vmatpush1.bf16.msra.mxu0 %v169
  %243 = vmatprep.subr.bf16.mxu0 %v166
  %244 = vmatpush1.bf16.msra.mxu0 %v165
  %245 = vmatprep.subr.bf16.mxu0 0
  %246 = vmatpush2.bf16.msra.mxu0 0
  %247 = vmatprep.subr.bf16.mxu0 0
  %248 = vmatpush2.bf16.msra.mxu0 0
  %249 = vmatprep.subr.bf16.mxu0 0
  %250 = vmatpush2.bf16.msra.mxu0 0
  %251 = vmatprep.subr.bf16.mxu0 0
  %252 = vmatpush2.bf16.msra.mxu0 0
  %253 = vmatprep.subr.bf16.mxu0 0
  %254 = vmatpush2.bf16.msra.mxu0 0
  %255 = vmatprep.subr.bf16.mxu0 0
  %256 = vmatpush2.bf16.msra.mxu0 0
  %257 = vmatprep.subr.bf16.mxu0 0
  %258 = vmatpush2.bf16.msra.mxu0 0
  %259 = vmatprep.subr.bf16.mxu0 0
  %260 = vmatpush2.bf16.msra.mxu0 0
  %261 = vmatprep.mubr.bf16.mxu0 0
  %262 = vmatmul.mubr.bf16.gmra.mxu0 %v68
  %v263 = vpop.f32.mrf.mxu0
  %v264 = vadd.f32 0.0, %v263
  %v265 = vpop.f32.mrf.mxu0
  %v266 = vadd.f32 0.0, %v265
  %v267 = vpop.f32.mrf.mxu0
  %v268 = vpop.f32.mrf.mxu0
  %269 = vdwg.mxu0
  %270 = vmatprep.subr.bf16.mxu0 %v196
  %271 = vmatpush1.bf16.msra.mxu0 %v195
  %272 = vmatprep.subr.bf16.mxu0 %v192
  %273 = vmatpush1.bf16.msra.mxu0 %v191
  %274 = vmatprep.subr.bf16.mxu0 %v188
  %275 = vmatpush1.bf16.msra.mxu0 %v187
  %276 = vmatprep.subr.bf16.mxu0 %v184
  %277 = vmatpush1.bf16.msra.mxu0 %v183
  %278 = vmatprep.subr.bf16.mxu0 %v180
  %279 = vmatpush1.bf16.msra.mxu0 %v179
  %280 = vmatprep.subr.bf16.mxu0 %v176
  %281 = vmatpush1.bf16.msra.mxu0 %v175
  %282 = vmatprep.subr.bf16.mxu0 %v172
  %283 = vmatpush1.bf16.msra.mxu0 %v171
  %284 = vmatprep.subr.bf16.mxu0 %v168
  %285 = vmatpush1.bf16.msra.mxu0 %v167
  %286 = vmatprep.subr.bf16.mxu0 0
  %287 = vmatpush2.bf16.msra.mxu0 0
  %288 = vmatprep.subr.bf16.mxu0 0
  %289 = vmatpush2.bf16.msra.mxu0 0
  %290 = vmatprep.subr.bf16.mxu0 0
  %291 = vmatpush2.bf16.msra.mxu0 0
  %292 = vmatprep.subr.bf16.mxu0 0
  %293 = vmatpush2.bf16.msra.mxu0 0
  %294 = vmatprep.subr.bf16.mxu0 0
  %295 = vmatpush2.bf16.msra.mxu0 0
  %296 = vmatprep.subr.bf16.mxu0 0
  %297 = vmatpush2.bf16.msra.mxu0 0
  %298 = vmatprep.subr.bf16.mxu0 0
  %299 = vmatpush2.bf16.msra.mxu0 0
  %300 = vmatprep.subr.bf16.mxu0 0
  %301 = vmatpush2.bf16.msra.mxu0 0
  %302 = vmatprep.mubr.bf16.mxu0 0
  %303 = vmatmul.mubr.bf16.gmra.mxu0 %v68
  %v304 = vpop.f32.mrf.mxu0
  %v305 = vadd.f32 0.0, %v304
  %v306 = vpop.f32.mrf.mxu0
  %v307 = vadd.f32 0.0, %v306
  %v308 = vpop.f32.mrf.mxu0
  %v309 = vpop.f32.mrf.mxu0
  %310 = vdwg.mxu0
  %vm311 = vcmask 138240
  %v313 = vsel %vm311, %v67, 0
  %vm315 = vcmask 1040384
  %v317 = vsel %vm315, %v29, 0
  %v320 = vsel %vm315, %v30, 0
  %v323 = vsel %vm315, %v31, 0
  %v326 = vsel %vm315, %v32, 0
  %328 = vmatprep.subr.mxu0 0.0
  %329 = vmatpush1.msra.mxu0 0.0
  %330 = vmatprep.subr.mxu0 0.0
  %331 = vmatpush1.msra.mxu0 0.0
  %332 = vmatprep.subr.mxu0 0.0
  %333 = vmatpush1.msra.mxu0 0.0
  %334 = vmatprep.subr.mxu0 0.0
  %335 = vmatpush1.msra.mxu0 0.0
  %336 = vmatprep.subr.mxu0 0.0
  %337 = vmatpush1.msra.mxu0 0.0
  %338 = vmatprep.subr.mxu0 0.0
  %339 = vmatpush1.msra.mxu0 0.0
  %340 = vmatprep.subr.mxu0 0.0
  %341 = vmatpush1.msra.mxu0 0.0
  %342 = vmatprep.subr.mxu0 0.0
  %343 = vmatpush1.msra.mxu0 0.0
  %344 = vmatprep.subr.mxu0 0.0
  %345 = vmatpush1.msra.mxu0 0.0
  %346 = vmatprep.subr.mxu0 0.0
  %347 = vmatpush1.msra.mxu0 0.0
  %348 = vmatprep.subr.mxu0 0.0
  %349 = vmatpush1.msra.mxu0 0.0
  %350 = vmatprep.subr.mxu0 0.0
  %351 = vmatpush1.msra.mxu0 0.0
  %352 = vmatprep.subr.mxu0 0.0
  %353 = vmatpush1.msra.mxu0 0.0
  %354 = vmatprep.subr.mxu0 %v320
  %355 = vmatpush1.msra.mxu0 %v317
  %356 = vmatprep.subr.mxu0 %v26
  %357 = vmatpush1.msra.mxu0 %v25
  %358 = vmatprep.subr.mxu0 %v22
  %359 = vmatpush1.msra.mxu0 %v21
  %360 = vmatprep.subr.mxu0 0.0
  %361 = vmatpush2.msra.mxu0 0.0
  %362 = vmatprep.subr.mxu0 0.0
  %363 = vmatpush2.msra.mxu0 0.0
  %364 = vmatprep.subr.mxu0 0.0
  %365 = vmatpush2.msra.mxu0 0.0
  %366 = vmatprep.subr.mxu0 0.0
  %367 = vmatpush2.msra.mxu0 0.0
  %368 = vmatprep.subr.mxu0 0.0
  %369 = vmatpush2.msra.mxu0 0.0
  %370 = vmatprep.subr.mxu0 0.0
  %371 = vmatpush2.msra.mxu0 0.0
  %372 = vmatprep.subr.mxu0 0.0
  %373 = vmatpush2.msra.mxu0 0.0
  %374 = vmatprep.subr.mxu0 0.0
  %375 = vmatpush2.msra.mxu0 0.0
  %376 = vmatprep.subr.mxu0 0.0
  %377 = vmatpush2.msra.mxu0 0.0
  %378 = vmatprep.subr.mxu0 0.0
  %379 = vmatpush2.msra.mxu0 0.0
  %380 = vmatprep.subr.mxu0 0.0
  %381 = vmatpush2.msra.mxu0 0.0
  %382 = vmatprep.subr.mxu0 0.0
  %383 = vmatpush2.msra.mxu0 0.0
  %384 = vmatprep.subr.mxu0 0.0
  %385 = vmatpush2.msra.mxu0 0.0
  %386 = vmatprep.subr.mxu0 0.0
  %387 = vmatpush2.msra.mxu0 0.0
  %388 = vmatprep.subr.mxu0 0.0
  %389 = vmatpush2.msra.mxu0 0.0
  %390 = vmatprep.subr.mxu0 0.0
  %391 = vmatpush2.msra.mxu0 0.0
  %392 = vmatprep.mubr.f32.mxu0 0.0
  %393 = vmatmul.mubr.f32.gmra.mxu0 %v313
  %v394 = vpop.f32.mrf.mxu0
  %v395 = vadd.f32 %v264, %v394
  %v396 = vpop.f32.mrf.mxu0
  %v397 = vadd.f32 %v266, %v396
  %398 = vdwg.mxu0
  %399 = vmatprep.subr.mxu0 0.0
  %400 = vmatpush1.msra.mxu0 0.0
  %401 = vmatprep.subr.mxu0 0.0
  %402 = vmatpush1.msra.mxu0 0.0
  %403 = vmatprep.subr.mxu0 0.0
  %404 = vmatpush1.msra.mxu0 0.0
  %405 = vmatprep.subr.mxu0 0.0
  %406 = vmatpush1.msra.mxu0 0.0
  %407 = vmatprep.subr.mxu0 0.0
  %408 = vmatpush1.msra.mxu0 0.0
  %409 = vmatprep.subr.mxu0 0.0
  %410 = vmatpush1.msra.mxu0 0.0
  %411 = vmatprep.subr.mxu0 0.0
  %412 = vmatpush1.msra.mxu0 0.0
  %413 = vmatprep.subr.mxu0 0.0
  %414 = vmatpush1.msra.mxu0 0.0
  %415 = vmatprep.subr.mxu0 0.0
  %416 = vmatpush1.msra.mxu0 0.0
  %417 = vmatprep.subr.mxu0 0.0
  %418 = vmatpush1.msra.mxu0 0.0
  %419 = vmatprep.subr.mxu0 0.0
  %420 = vmatpush1.msra.mxu0 0.0
  %421 = vmatprep.subr.mxu0 0.0
  %422 = vmatpush1.msra.mxu0 0.0
  %423 = vmatprep.subr.mxu0 0.0
  %424 = vmatpush1.msra.mxu0 0.0
  %425 = vmatprep.subr.mxu0 %v326
  %426 = vmatpush1.msra.mxu0 %v323
  %427 = vmatprep.subr.mxu0 %v28
  %428 = vmatpush1.msra.mxu0 %v27
  %429 = vmatprep.subr.mxu0 %v24
  %430 = vmatpush1.msra.mxu0 %v23
  %431 = vmatprep.subr.mxu0 0.0
  %432 = vmatpush2.msra.mxu0 0.0
  %433 = vmatprep.subr.mxu0 0.0
  %434 = vmatpush2.msra.mxu0 0.0
  %435 = vmatprep.subr.mxu0 0.0
  %436 = vmatpush2.msra.mxu0 0.0
  %437 = vmatprep.subr.mxu0 0.0
  %438 = vmatpush2.msra.mxu0 0.0
  %439 = vmatprep.subr.mxu0 0.0
  %440 = vmatpush2.msra.mxu0 0.0
  %441 = vmatprep.subr.mxu0 0.0
  %442 = vmatpush2.msra.mxu0 0.0
  %443 = vmatprep.subr.mxu0 0.0
  %444 = vmatpush2.msra.mxu0 0.0
  %445 = vmatprep.subr.mxu0 0.0
  %446 = vmatpush2.msra.mxu0 0.0
  %447 = vmatprep.subr.mxu0 0.0
  %448 = vmatpush2.msra.mxu0 0.0
  %449 = vmatprep.subr.mxu0 0.0
  %450 = vmatpush2.msra.mxu0 0.0
  %451 = vmatprep.subr.mxu0 0.0
  %452 = vmatpush2.msra.mxu0 0.0
  %453 = vmatprep.subr.mxu0 0.0
  %454 = vmatpush2.msra.mxu0 0.0
  %455 = vmatprep.subr.mxu0 0.0
  %456 = vmatpush2.msra.mxu0 0.0
  %457 = vmatprep.subr.mxu0 0.0
  %458 = vmatpush2.msra.mxu0 0.0
  %459 = vmatprep.subr.mxu0 0.0
  %460 = vmatpush2.msra.mxu0 0.0
  %461 = vmatprep.subr.mxu0 0.0
  %462 = vmatpush2.msra.mxu0 0.0
  %463 = vmatprep.mubr.f32.mxu0 0.0
  %464 = vmatmul.mubr.f32.gmra.mxu0 %v313
  %v465 = vpop.f32.mrf.mxu0
  %v466 = vadd.f32 %v305, %v465
  %v467 = vpop.f32.mrf.mxu0
  %v468 = vadd.f32 %v307, %v467
  %469 = vdwg.mxu0
  %v470 = vxor.u32 %v395, 2147483648
  %v471 = vxor.u32 %v397, 2147483648
  %v472 = vxor.u32 %v466, 2147483648
  %v473 = vmul.f32 %v470, 1.442695
  %v474 = vpow.pop %v473
  %v475 = vmul.f32 %v471, 1.442695
  %v476 = vpow.pop %v475
  %v477 = vmul.f32 %v472, 1.442695
  %v478 = vpow.pop %v477
  %v479 = vadd.f32 %v474, 1.0
  %v480 = vadd.f32 %v476, 1.0
  %v481 = vadd.f32 %v478, 1.0
  %v482 = vrcp.pop %v479
  %v483 = vmul.f32 1.0, %v482
  %v484 = vrcp.pop %v480
  %v485 = vmul.f32 1.0, %v484
  %v486 = vrcp.pop %v481
  %v487 = vmul.f32 1.0, %v486
  %v488 = vtanh.pop %v468
  %v489 = vmul.f32 %v485, %v66
  %v490 = vmul.f32 %v483, %v488
  %v491 = vadd.f32 %v489, %v490
  %v492 = vtanh.pop %v491
  %v493 = vmul.f32 %v487, %v492
  %s494 = scalar_lea.vmem %s0, 8
  %v495 = vld [vmem:[%s494] sm:$0xff]
  %v496 = vpack.c.bf16 %v493, %v493
  %497 = vmatprep.subr.bf16.mxu0 %v194
  %498 = vmatpush1.bf16.msra.mxu0 %v193
  %499 = vmatprep.subr.bf16.mxu0 %v190
  %500 = vmatpush1.bf16.msra.mxu0 %v189
  %501 = vmatprep.subr.bf16.mxu0 %v186
  %502 = vmatpush1.bf16.msra.mxu0 %v185
  %503 = vmatprep.subr.bf16.mxu0 %v182
  %504 = vmatpush1.bf16.msra.mxu0 %v181
  %505 = vmatprep.subr.bf16.mxu0 %v178
  %506 = vmatpush1.bf16.msra.mxu0 %v177
  %507 = vmatprep.subr.bf16.mxu0 %v174
  %508 = vmatpush1.bf16.msra.mxu0 %v173
  %509 = vmatprep.subr.bf16.mxu0 %v170
  %510 = vmatpush1.bf16.msra.mxu0 %v169
  %511 = vmatprep.subr.bf16.mxu0 %v166
  %512 = vmatpush1.bf16.msra.mxu0 %v165
  %513 = vmatprep.subr.bf16.mxu0 0
  %514 = vmatpush2.bf16.msra.mxu0 0
  %515 = vmatprep.subr.bf16.mxu0 0
  %516 = vmatpush2.bf16.msra.mxu0 0
  %517 = vmatprep.subr.bf16.mxu0 0
  %518 = vmatpush2.bf16.msra.mxu0 0
  %519 = vmatprep.subr.bf16.mxu0 0
  %520 = vmatpush2.bf16.msra.mxu0 0
  %521 = vmatprep.subr.bf16.mxu0 0
  %522 = vmatpush2.bf16.msra.mxu0 0
  %523 = vmatprep.subr.bf16.mxu0 0
  %524 = vmatpush2.bf16.msra.mxu0 0
  %525 = vmatprep.subr.bf16.mxu0 0
  %526 = vmatpush2.bf16.msra.mxu0 0
  %527 = vmatprep.subr.bf16.mxu0 0
  %528 = vmatpush2.bf16.msra.mxu0 0
  %529 = vmatprep.mubr.bf16.mxu0 0
  %530 = vmatmul.mubr.bf16.gmra.mxu0 %v496
  %v531 = vpop.f32.mrf.mxu0
  %v532 = vadd.f32 0.0, %v531
  %v533 = vpop.f32.mrf.mxu0
  %v534 = vadd.f32 0.0, %v533
  %v535 = vpop.f32.mrf.mxu0
  %v536 = vpop.f32.mrf.mxu0
  %537 = vdwg.mxu0
  %538 = vmatprep.subr.bf16.mxu0 %v196
  %539 = vmatpush1.bf16.msra.mxu0 %v195
  %540 = vmatprep.subr.bf16.mxu0 %v192
  %541 = vmatpush1.bf16.msra.mxu0 %v191
  %542 = vmatprep.subr.bf16.mxu0 %v188
  %543 = vmatpush1.bf16.msra.mxu0 %v187
  %544 = vmatprep.subr.bf16.mxu0 %v184
  %545 = vmatpush1.bf16.msra.mxu0 %v183
  %546 = vmatprep.subr.bf16.mxu0 %v180
  %547 = vmatpush1.bf16.msra.mxu0 %v179
  %548 = vmatprep.subr.bf16.mxu0 %v176
  %549 = vmatpush1.bf16.msra.mxu0 %v175
  %550 = vmatprep.subr.bf16.mxu0 %v172
  %551 = vmatpush1.bf16.msra.mxu0 %v171
  %552 = vmatprep.subr.bf16.mxu0 %v168
  %553 = vmatpush1.bf16.msra.mxu0 %v167
  %554 = vmatprep.subr.bf16.mxu0 0
  %555 = vmatpush2.bf16.msra.mxu0 0
  %556 = vmatprep.subr.bf16.mxu0 0
  %557 = vmatpush2.bf16.msra.mxu0 0
  %558 = vmatprep.subr.bf16.mxu0 0
  %559 = vmatpush2.bf16.msra.mxu0 0
  %560 = vmatprep.subr.bf16.mxu0 0
  %561 = vmatpush2.bf16.msra.mxu0 0
  %562 = vmatprep.subr.bf16.mxu0 0
  %563 = vmatpush2.bf16.msra.mxu0 0
  %564 = vmatprep.subr.bf16.mxu0 0
  %565 = vmatpush2.bf16.msra.mxu0 0
  %566 = vmatprep.subr.bf16.mxu0 0
  %567 = vmatpush2.bf16.msra.mxu0 0
  %568 = vmatprep.subr.bf16.mxu0 0
  %569 = vmatpush2.bf16.msra.mxu0 0
  %570 = vmatprep.mubr.bf16.mxu0 0
  %571 = vmatmul.mubr.bf16.gmra.mxu0 %v496
  %v572 = vpop.f32.mrf.mxu0
  %v573 = vadd.f32 0.0, %v572
  %v574 = vpop.f32.mrf.mxu0
  %v575 = vadd.f32 0.0, %v574
  %v576 = vpop.f32.mrf.mxu0
  %v577 = vpop.f32.mrf.mxu0
  %578 = vdwg.mxu0
  %v580 = vsel %vm311, %v495, 0
  %582 = vmatprep.subr.mxu0 0.0
  %583 = vmatpush1.msra.mxu0 0.0
  %584 = vmatprep.subr.mxu0 0.0
  %585 = vmatpush1.msra.mxu0 0.0
  %586 = vmatprep.subr.mxu0 0.0
  %587 = vmatpush1.msra.mxu0 0.0
  %588 = vmatprep.subr.mxu0 0.0
  %589 = vmatpush1.msra.mxu0 0.0
  %590 = vmatprep.subr.mxu0 0.0
  %591 = vmatpush1.msra.mxu0 0.0
  %592 = vmatprep.subr.mxu0 0.0
  %593 = vmatpush1.msra.mxu0 0.0
  %594 = vmatprep.subr.mxu0 0.0
  %595 = vmatpush1.msra.mxu0 0.0
  %596 = vmatprep.subr.mxu0 0.0
  %597 = vmatpush1.msra.mxu0 0.0
  %598 = vmatprep.subr.mxu0 0.0
  %599 = vmatpush1.msra.mxu0 0.0
  %600 = vmatprep.subr.mxu0 0.0
  %601 = vmatpush1.msra.mxu0 0.0
  %602 = vmatprep.subr.mxu0 0.0
  %603 = vmatpush1.msra.mxu0 0.0
  %604 = vmatprep.subr.mxu0 0.0
  %605 = vmatpush1.msra.mxu0 0.0
  %606 = vmatprep.subr.mxu0 0.0
  %607 = vmatpush1.msra.mxu0 0.0
  %608 = vmatprep.subr.mxu0 %v320
  %609 = vmatpush1.msra.mxu0 %v317
  %610 = vmatprep.subr.mxu0 %v26
  %611 = vmatpush1.msra.mxu0 %v25
  %612 = vmatprep.subr.mxu0 %v22
  %613 = vmatpush1.msra.mxu0 %v21
  %614 = vmatprep.subr.mxu0 0.0
  %615 = vmatpush2.msra.mxu0 0.0
  %616 = vmatprep.subr.mxu0 0.0
  %617 = vmatpush2.msra.mxu0 0.0
  %618 = vmatprep.subr.mxu0 0.0
  %619 = vmatpush2.msra.mxu0 0.0
  %620 = vmatprep.subr.mxu0 0.0
  %621 = vmatpush2.msra.mxu0 0.0
  %622 = vmatprep.subr.mxu0 0.0
  %623 = vmatpush2.msra.mxu0 0.0
  %624 = vmatprep.subr.mxu0 0.0
  %625 = vmatpush2.msra.mxu0 0.0
  %626 = vmatprep.subr.mxu0 0.0
  %627 = vmatpush2.msra.mxu0 0.0
  %628 = vmatprep.subr.mxu0 0.0
  %629 = vmatpush2.msra.mxu0 0.0
  %630 = vmatprep.subr.mxu0 0.0
  %631 = vmatpush2.msra.mxu0 0.0
  %632 = vmatprep.subr.mxu0 0.0
  %633 = vmatpush2.msra.mxu0 0.0
  %634 = vmatprep.subr.mxu0 0.0
  %635 = vmatpush2.msra.mxu0 0.0
  %636 = vmatprep.subr.mxu0 0.0
  %637 = vmatpush2.msra.mxu0 0.0
  %638 = vmatprep.subr.mxu0 0.0
  %639 = vmatpush2.msra.mxu0 0.0
  %640 = vmatprep.subr.mxu0 0.0
  %641 = vmatpush2.msra.mxu0 0.0
  %642 = vmatprep.subr.mxu0 0.0
  %643 = vmatpush2.msra.mxu0 0.0
  %644 = vmatprep.subr.mxu0 0.0
  %645 = vmatpush2.msra.mxu0 0.0
  %646 = vmatprep.mubr.f32.mxu0 0.0
  %647 = vmatmul.mubr.f32.gmra.mxu0 %v580
  %v648 = vpop.f32.mrf.mxu0
  %v649 = vadd.f32 %v532, %v648
  %v650 = vpop.f32.mrf.mxu0
  %v651 = vadd.f32 %v534, %v650
  %652 = vdwg.mxu0
  %653 = vmatprep.subr.mxu0 0.0
  %654 = vmatpush1.msra.mxu0 0.0
  %655 = vmatprep.subr.mxu0 0.0
  %656 = vmatpush1.msra.mxu0 0.0
  %657 = vmatprep.subr.mxu0 0.0
  %658 = vmatpush1.msra.mxu0 0.0
  %659 = vmatprep.subr.mxu0 0.0
  %660 = vmatpush1.msra.mxu0 0.0
  %661 = vmatprep.subr.mxu0 0.0
  %662 = vmatpush1.msra.mxu0 0.0
  %663 = vmatprep.subr.mxu0 0.0
  %664 = vmatpush1.msra.mxu0 0.0
  %665 = vmatprep.subr.mxu0 0.0
  %666 = vmatpush1.msra.mxu0 0.0
  %667 = vmatprep.subr.mxu0 0.0
  %668 = vmatpush1.msra.mxu0 0.0
  %669 = vmatprep.subr.mxu0 0.0
  %670 = vmatpush1.msra.mxu0 0.0
  %671 = vmatprep.subr.mxu0 0.0
  %672 = vmatpush1.msra.mxu0 0.0
  %673 = vmatprep.subr.mxu0 0.0
  %674 = vmatpush1.msra.mxu0 0.0
  %675 = vmatprep.subr.mxu0 0.0
  %676 = vmatpush1.msra.mxu0 0.0
  %677 = vmatprep.subr.mxu0 0.0
  %678 = vmatpush1.msra.mxu0 0.0
  %679 = vmatprep.subr.mxu0 %v326
  %680 = vmatpush1.msra.mxu0 %v323
  %681 = vmatprep.subr.mxu0 %v28
  %682 = vmatpush1.msra.mxu0 %v27
  %683 = vmatprep.subr.mxu0 %v24
  %684 = vmatpush1.msra.mxu0 %v23
  %685 = vmatprep.subr.mxu0 0.0
  %686 = vmatpush2.msra.mxu0 0.0
  %687 = vmatprep.subr.mxu0 0.0
  %688 = vmatpush2.msra.mxu0 0.0
  %689 = vmatprep.subr.mxu0 0.0
  %690 = vmatpush2.msra.mxu0 0.0
  %691 = vmatprep.subr.mxu0 0.0
  %692 = vmatpush2.msra.mxu0 0.0
  %693 = vmatprep.subr.mxu0 0.0
  %694 = vmatpush2.msra.mxu0 0.0
  %695 = vmatprep.subr.mxu0 0.0
  %696 = vmatpush2.msra.mxu0 0.0
  %697 = vmatprep.subr.mxu0 0.0
  %698 = vmatpush2.msra.mxu0 0.0
  %699 = vmatprep.subr.mxu0 0.0
  %700 = vmatpush2.msra.mxu0 0.0
  %701 = vmatprep.subr.mxu0 0.0
  %702 = vmatpush2.msra.mxu0 0.0
  %703 = vmatprep.subr.mxu0 0.0
  %704 = vmatpush2.msra.mxu0 0.0
  %705 = vmatprep.subr.mxu0 0.0
  %706 = vmatpush2.msra.mxu0 0.0
  %707 = vmatprep.subr.mxu0 0.0
  %708 = vmatpush2.msra.mxu0 0.0
  %709 = vmatprep.subr.mxu0 0.0
  %710 = vmatpush2.msra.mxu0 0.0
  %711 = vmatprep.subr.mxu0 0.0
  %712 = vmatpush2.msra.mxu0 0.0
  %713 = vmatprep.subr.mxu0 0.0
  %714 = vmatpush2.msra.mxu0 0.0
  %715 = vmatprep.subr.mxu0 0.0
  %716 = vmatpush2.msra.mxu0 0.0
  %717 = vmatprep.mubr.f32.mxu0 0.0
  %718 = vmatmul.mubr.f32.gmra.mxu0 %v580
  %v719 = vpop.f32.mrf.mxu0
  %v720 = vadd.f32 %v573, %v719
  %v721 = vpop.f32.mrf.mxu0
  %v722 = vadd.f32 %v575, %v721
  %723 = vdwg.mxu0
  %v724 = vxor.u32 %v649, 2147483648
  %v725 = vxor.u32 %v651, 2147483648
  %v726 = vxor.u32 %v720, 2147483648
  %v727 = vmul.f32 %v724, 1.442695
  %v728 = vpow.pop %v727
  %v729 = vmul.f32 %v725, 1.442695
  %v730 = vpow.pop %v729
  %v731 = vmul.f32 %v726, 1.442695
  %v732 = vpow.pop %v731
  %v733 = vadd.f32 %v728, 1.0
  %v734 = vadd.f32 %v730, 1.0
  %v735 = vadd.f32 %v732, 1.0
  %v736 = vrcp.pop %v733
  %v737 = vmul.f32 1.0, %v736
  %v738 = vrcp.pop %v734
  %v739 = vmul.f32 1.0, %v738
  %v740 = vrcp.pop %v735
  %v741 = vmul.f32 1.0, %v740
  %v742 = vtanh.pop %v722
  %v743 = vmul.f32 %v739, %v491
  %v744 = vmul.f32 %v737, %v742
  %v745 = vadd.f32 %v743, %v744
  %v746 = vtanh.pop %v745
  %v747 = vmul.f32 %v741, %v746
  %s748 = scalar_lea.vmem %s0, 16
  %v749 = vld [vmem:[%s748] sm:$0xff]
  %v750 = vpack.c.bf16 %v747, %v747
  %751 = vmatprep.subr.bf16.mxu0 %v194
  %752 = vmatpush1.bf16.msra.mxu0 %v193
  %753 = vmatprep.subr.bf16.mxu0 %v190
  %754 = vmatpush1.bf16.msra.mxu0 %v189
  %755 = vmatprep.subr.bf16.mxu0 %v186
  %756 = vmatpush1.bf16.msra.mxu0 %v185
  %757 = vmatprep.subr.bf16.mxu0 %v182
  %758 = vmatpush1.bf16.msra.mxu0 %v181
  %759 = vmatprep.subr.bf16.mxu0 %v178
  %760 = vmatpush1.bf16.msra.mxu0 %v177
  %761 = vmatprep.subr.bf16.mxu0 %v174
  %762 = vmatpush1.bf16.msra.mxu0 %v173
  %763 = vmatprep.subr.bf16.mxu0 %v170
  %764 = vmatpush1.bf16.msra.mxu0 %v169
  %765 = vmatprep.subr.bf16.mxu0 %v166
  %766 = vmatpush1.bf16.msra.mxu0 %v165
  %767 = vmatprep.subr.bf16.mxu0 0
  %768 = vmatpush2.bf16.msra.mxu0 0
  %769 = vmatprep.subr.bf16.mxu0 0
  %770 = vmatpush2.bf16.msra.mxu0 0
  %771 = vmatprep.subr.bf16.mxu0 0
  %772 = vmatpush2.bf16.msra.mxu0 0
  %773 = vmatprep.subr.bf16.mxu0 0
  %774 = vmatpush2.bf16.msra.mxu0 0
  %775 = vmatprep.subr.bf16.mxu0 0
  %776 = vmatpush2.bf16.msra.mxu0 0
  %777 = vmatprep.subr.bf16.mxu0 0
  %778 = vmatpush2.bf16.msra.mxu0 0
  %779 = vmatprep.subr.bf16.mxu0 0
  %780 = vmatpush2.bf16.msra.mxu0 0
  %781 = vmatprep.subr.bf16.mxu0 0
  %782 = vmatpush2.bf16.msra.mxu0 0
  %783 = vmatprep.mubr.bf16.mxu0 0
  %784 = vmatmul.mubr.bf16.gmra.mxu0 %v750
  %v785 = vpop.f32.mrf.mxu0
  %v786 = vadd.f32 0.0, %v785
  %v787 = vpop.f32.mrf.mxu0
  %v788 = vadd.f32 0.0, %v787
  %v789 = vpop.f32.mrf.mxu0
  %v790 = vpop.f32.mrf.mxu0
  %791 = vdwg.mxu0
  %792 = vmatprep.subr.bf16.mxu0 %v196
  %793 = vmatpush1.bf16.msra.mxu0 %v195
  %794 = vmatprep.subr.bf16.mxu0 %v192
  %795 = vmatpush1.bf16.msra.mxu0 %v191
  %796 = vmatprep.subr.bf16.mxu0 %v188
  %797 = vmatpush1.bf16.msra.mxu0 %v187
  %798 = vmatprep.subr.bf16.mxu0 %v184
  %799 = vmatpush1.bf16.msra.mxu0 %v183
  %800 = vmatprep.subr.bf16.mxu0 %v180
  %801 = vmatpush1.bf16.msra.mxu0 %v179
  %802 = vmatprep.subr.bf16.mxu0 %v176
  %803 = vmatpush1.bf16.msra.mxu0 %v175
  %804 = vmatprep.subr.bf16.mxu0 %v172
  %805 = vmatpush1.bf16.msra.mxu0 %v171
  %806 = vmatprep.subr.bf16.mxu0 %v168
  %807 = vmatpush1.bf16.msra.mxu0 %v167
  %808 = vmatprep.subr.bf16.mxu0 0
  %809 = vmatpush2.bf16.msra.mxu0 0
  %810 = vmatprep.subr.bf16.mxu0 0
  %811 = vmatpush2.bf16.msra.mxu0 0
  %812 = vmatprep.subr.bf16.mxu0 0
  %813 = vmatpush2.bf16.msra.mxu0 0
  %814 = vmatprep.subr.bf16.mxu0 0
  %815 = vmatpush2.bf16.msra.mxu0 0
  %816 = vmatprep.subr.bf16.mxu0 0
  %817 = vmatpush2.bf16.msra.mxu0 0
  %818 = vmatprep.subr.bf16.mxu0 0
  %819 = vmatpush2.bf16.msra.mxu0 0
  %820 = vmatprep.subr.bf16.mxu0 0
  %821 = vmatpush2.bf16.msra.mxu0 0
  %822 = vmatprep.subr.bf16.mxu0 0
  %823 = vmatpush2.bf16.msra.mxu0 0
  %824 = vmatprep.mubr.bf16.mxu0 0
  %825 = vmatmul.mubr.bf16.gmra.mxu0 %v750
  %v826 = vpop.f32.mrf.mxu0
  %v827 = vadd.f32 0.0, %v826
  %v828 = vpop.f32.mrf.mxu0
  %v829 = vadd.f32 0.0, %v828
  %v830 = vpop.f32.mrf.mxu0
  %v831 = vpop.f32.mrf.mxu0
  %832 = vdwg.mxu0
  %v834 = vsel %vm311, %v749, 0
  %836 = vmatprep.subr.mxu0 0.0
  %837 = vmatpush1.msra.mxu0 0.0
  %838 = vmatprep.subr.mxu0 0.0
  %839 = vmatpush1.msra.mxu0 0.0
  %840 = vmatprep.subr.mxu0 0.0
  %841 = vmatpush1.msra.mxu0 0.0
  %842 = vmatprep.subr.mxu0 0.0
  %843 = vmatpush1.msra.mxu0 0.0
  %844 = vmatprep.subr.mxu0 0.0
  %845 = vmatpush1.msra.mxu0 0.0
  %846 = vmatprep.subr.mxu0 0.0
  %847 = vmatpush1.msra.mxu0 0.0
  %848 = vmatprep.subr.mxu0 0.0
  %849 = vmatpush1.msra.mxu0 0.0
  %850 = vmatprep.subr.mxu0 0.0
  %851 = vmatpush1.msra.mxu0 0.0
  %852 = vmatprep.subr.mxu0 0.0
  %853 = vmatpush1.msra.mxu0 0.0
  %854 = vmatprep.subr.mxu0 0.0
  %855 = vmatpush1.msra.mxu0 0.0
  %856 = vmatprep.subr.mxu0 0.0
  %857 = vmatpush1.msra.mxu0 0.0
  %858 = vmatprep.subr.mxu0 0.0
  %859 = vmatpush1.msra.mxu0 0.0
  %860 = vmatprep.subr.mxu0 0.0
  %861 = vmatpush1.msra.mxu0 0.0
  %862 = vmatprep.subr.mxu0 %v320
  %863 = vmatpush1.msra.mxu0 %v317
  %864 = vmatprep.subr.mxu0 %v26
  %865 = vmatpush1.msra.mxu0 %v25
  %866 = vmatprep.subr.mxu0 %v22
  %867 = vmatpush1.msra.mxu0 %v21
  %868 = vmatprep.subr.mxu0 0.0
  %869 = vmatpush2.msra.mxu0 0.0
  %870 = vmatprep.subr.mxu0 0.0
  %871 = vmatpush2.msra.mxu0 0.0
  %872 = vmatprep.subr.mxu0 0.0
  %873 = vmatpush2.msra.mxu0 0.0
  %874 = vmatprep.subr.mxu0 0.0
  %875 = vmatpush2.msra.mxu0 0.0
  %876 = vmatprep.subr.mxu0 0.0
  %877 = vmatpush2.msra.mxu0 0.0
  %878 = vmatprep.subr.mxu0 0.0
  %879 = vmatpush2.msra.mxu0 0.0
  %880 = vmatprep.subr.mxu0 0.0
  %881 = vmatpush2.msra.mxu0 0.0
  %882 = vmatprep.subr.mxu0 0.0
  %883 = vmatpush2.msra.mxu0 0.0
  %884 = vmatprep.subr.mxu0 0.0
  %885 = vmatpush2.msra.mxu0 0.0
  %886 = vmatprep.subr.mxu0 0.0
  %887 = vmatpush2.msra.mxu0 0.0
  %888 = vmatprep.subr.mxu0 0.0
  %889 = vmatpush2.msra.mxu0 0.0
  %890 = vmatprep.subr.mxu0 0.0
  %891 = vmatpush2.msra.mxu0 0.0
  %892 = vmatprep.subr.mxu0 0.0
  %893 = vmatpush2.msra.mxu0 0.0
  %894 = vmatprep.subr.mxu0 0.0
  %895 = vmatpush2.msra.mxu0 0.0
  %896 = vmatprep.subr.mxu0 0.0
  %897 = vmatpush2.msra.mxu0 0.0
  %898 = vmatprep.subr.mxu0 0.0
  %899 = vmatpush2.msra.mxu0 0.0
  %900 = vmatprep.mubr.f32.mxu0 0.0
  %901 = vmatmul.mubr.f32.gmra.mxu0 %v834
  %v902 = vpop.f32.mrf.mxu0
  %v903 = vadd.f32 %v786, %v902
  %v904 = vpop.f32.mrf.mxu0
  %v905 = vadd.f32 %v788, %v904
  %906 = vdwg.mxu0
  %907 = vmatprep.subr.mxu0 0.0
  %908 = vmatpush1.msra.mxu0 0.0
  %909 = vmatprep.subr.mxu0 0.0
  %910 = vmatpush1.msra.mxu0 0.0
  %911 = vmatprep.subr.mxu0 0.0
  %912 = vmatpush1.msra.mxu0 0.0
  %913 = vmatprep.subr.mxu0 0.0
  %914 = vmatpush1.msra.mxu0 0.0
  %915 = vmatprep.subr.mxu0 0.0
  %916 = vmatpush1.msra.mxu0 0.0
  %917 = vmatprep.subr.mxu0 0.0
  %918 = vmatpush1.msra.mxu0 0.0
  %919 = vmatprep.subr.mxu0 0.0
  %920 = vmatpush1.msra.mxu0 0.0
  %921 = vmatprep.subr.mxu0 0.0
  %922 = vmatpush1.msra.mxu0 0.0
  %923 = vmatprep.subr.mxu0 0.0
  %924 = vmatpush1.msra.mxu0 0.0
  %925 = vmatprep.subr.mxu0 0.0
  %926 = vmatpush1.msra.mxu0 0.0
  %927 = vmatprep.subr.mxu0 0.0
  %928 = vmatpush1.msra.mxu0 0.0
  %929 = vmatprep.subr.mxu0 0.0
  %930 = vmatpush1.msra.mxu0 0.0
  %931 = vmatprep.subr.mxu0 0.0
  %932 = vmatpush1.msra.mxu0 0.0
  %933 = vmatprep.subr.mxu0 %v326
  %934 = vmatpush1.msra.mxu0 %v323
  %935 = vmatprep.subr.mxu0 %v28
  %936 = vmatpush1.msra.mxu0 %v27
  %937 = vmatprep.subr.mxu0 %v24
  %938 = vmatpush1.msra.mxu0 %v23
  %939 = vmatprep.subr.mxu0 0.0
  %940 = vmatpush2.msra.mxu0 0.0
  %941 = vmatprep.subr.mxu0 0.0
  %942 = vmatpush2.msra.mxu0 0.0
  %943 = vmatprep.subr.mxu0 0.0
  %944 = vmatpush2.msra.mxu0 0.0
  %945 = vmatprep.subr.mxu0 0.0
  %946 = vmatpush2.msra.mxu0 0.0
  %947 = vmatprep.subr.mxu0 0.0
  %948 = vmatpush2.msra.mxu0 0.0
  %949 = vmatprep.subr.mxu0 0.0
  %950 = vmatpush2.msra.mxu0 0.0
  %951 = vmatprep.subr.mxu0 0.0
  %952 = vmatpush2.msra.mxu0 0.0
  %953 = vmatprep.subr.mxu0 0.0
  %954 = vmatpush2.msra.mxu0 0.0
  %955 = vmatprep.subr.mxu0 0.0
  %956 = vmatpush2.msra.mxu0 0.0
  %957 = vmatprep.subr.mxu0 0.0
  %958 = vmatpush2.msra.mxu0 0.0
  %959 = vmatprep.subr.mxu0 0.0
  %960 = vmatpush2.msra.mxu0 0.0
  %961 = vmatprep.subr.mxu0 0.0
  %962 = vmatpush2.msra.mxu0 0.0
  %963 = vmatprep.subr.mxu0 0.0
  %964 = vmatpush2.msra.mxu0 0.0
  %965 = vmatprep.subr.mxu0 0.0
  %966 = vmatpush2.msra.mxu0 0.0
  %967 = vmatprep.subr.mxu0 0.0
  %968 = vmatpush2.msra.mxu0 0.0
  %969 = vmatprep.subr.mxu0 0.0
  %970 = vmatpush2.msra.mxu0 0.0
  %971 = vmatprep.mubr.f32.mxu0 0.0
  %972 = vmatmul.mubr.f32.gmra.mxu0 %v834
  %v973 = vpop.f32.mrf.mxu0
  %v974 = vadd.f32 %v827, %v973
  %v975 = vpop.f32.mrf.mxu0
  %v976 = vadd.f32 %v829, %v975
  %977 = vdwg.mxu0
  %v978 = vxor.u32 %v903, 2147483648
  %v979 = vxor.u32 %v905, 2147483648
  %v980 = vxor.u32 %v974, 2147483648
  %v981 = vmul.f32 %v978, 1.442695
  %v982 = vpow.pop %v981
  %v983 = vmul.f32 %v979, 1.442695
  %v984 = vpow.pop %v983
  %v985 = vmul.f32 %v980, 1.442695
  %v986 = vpow.pop %v985
  %v987 = vadd.f32 %v982, 1.0
  %v988 = vadd.f32 %v984, 1.0
  %v989 = vadd.f32 %v986, 1.0
  %v990 = vrcp.pop %v987
  %v991 = vmul.f32 1.0, %v990
  %v992 = vrcp.pop %v988
  %v993 = vmul.f32 1.0, %v992
  %v994 = vrcp.pop %v989
  %v995 = vmul.f32 1.0, %v994
  %v996 = vtanh.pop %v976
  %v997 = vmul.f32 %v993, %v745
  %v998 = vmul.f32 %v991, %v996
  %v999 = vadd.f32 %v997, %v998
  %v1000 = vtanh.pop %v999
  %v1001 = vmul.f32 %v995, %v1000
  %s1002 = scalar_lea.vmem %s0, 24
  %v1003 = vld [vmem:[%s1002] sm:$0xff]
  %v1004 = vpack.c.bf16 %v1001, %v1001
  %1005 = vmatprep.subr.bf16.mxu0 %v194
  %1006 = vmatpush1.bf16.msra.mxu0 %v193
  %1007 = vmatprep.subr.bf16.mxu0 %v190
  %1008 = vmatpush1.bf16.msra.mxu0 %v189
  %1009 = vmatprep.subr.bf16.mxu0 %v186
  %1010 = vmatpush1.bf16.msra.mxu0 %v185
  %1011 = vmatprep.subr.bf16.mxu0 %v182
  %1012 = vmatpush1.bf16.msra.mxu0 %v181
  %1013 = vmatprep.subr.bf16.mxu0 %v178
  %1014 = vmatpush1.bf16.msra.mxu0 %v177
  %1015 = vmatprep.subr.bf16.mxu0 %v174
  %1016 = vmatpush1.bf16.msra.mxu0 %v173
  %1017 = vmatprep.subr.bf16.mxu0 %v170
  %1018 = vmatpush1.bf16.msra.mxu0 %v169
  %1019 = vmatprep.subr.bf16.mxu0 %v166
  %1020 = vmatpush1.bf16.msra.mxu0 %v165
  %1021 = vmatprep.subr.bf16.mxu0 0
  %1022 = vmatpush2.bf16.msra.mxu0 0
  %1023 = vmatprep.subr.bf16.mxu0 0
  %1024 = vmatpush2.bf16.msra.mxu0 0
  %1025 = vmatprep.subr.bf16.mxu0 0
  %1026 = vmatpush2.bf16.msra.mxu0 0
  %1027 = vmatprep.subr.bf16.mxu0 0
  %1028 = vmatpush2.bf16.msra.mxu0 0
  %1029 = vmatprep.subr.bf16.mxu0 0
  %1030 = vmatpush2.bf16.msra.mxu0 0
  %1031 = vmatprep.subr.bf16.mxu0 0
  %1032 = vmatpush2.bf16.msra.mxu0 0
  %1033 = vmatprep.subr.bf16.mxu0 0
  %1034 = vmatpush2.bf16.msra.mxu0 0
  %1035 = vmatprep.subr.bf16.mxu0 0
  %1036 = vmatpush2.bf16.msra.mxu0 0
  %1037 = vmatprep.mubr.bf16.mxu0 0
  %1038 = vmatmul.mubr.bf16.gmra.mxu0 %v1004
  %v1039 = vpop.f32.mrf.mxu0
  %v1040 = vadd.f32 0.0, %v1039
  %v1041 = vpop.f32.mrf.mxu0
  %v1042 = vadd.f32 0.0, %v1041
  %v1043 = vpop.f32.mrf.mxu0
  %v1044 = vpop.f32.mrf.mxu0
  %1045 = vdwg.mxu0
  %1046 = vmatprep.subr.bf16.mxu0 %v196
  %1047 = vmatpush1.bf16.msra.mxu0 %v195
  %1048 = vmatprep.subr.bf16.mxu0 %v192
  %1049 = vmatpush1.bf16.msra.mxu0 %v191
  %1050 = vmatprep.subr.bf16.mxu0 %v188
  %1051 = vmatpush1.bf16.msra.mxu0 %v187
  %1052 = vmatprep.subr.bf16.mxu0 %v184
  %1053 = vmatpush1.bf16.msra.mxu0 %v183
  %1054 = vmatprep.subr.bf16.mxu0 %v180
  %1055 = vmatpush1.bf16.msra.mxu0 %v179
  %1056 = vmatprep.subr.bf16.mxu0 %v176
  %1057 = vmatpush1.bf16.msra.mxu0 %v175
  %1058 = vmatprep.subr.bf16.mxu0 %v172
  %1059 = vmatpush1.bf16.msra.mxu0 %v171
  %1060 = vmatprep.subr.bf16.mxu0 %v168
  %1061 = vmatpush1.bf16.msra.mxu0 %v167
  %1062 = vmatprep.subr.bf16.mxu0 0
  %1063 = vmatpush2.bf16.msra.mxu0 0
  %1064 = vmatprep.subr.bf16.mxu0 0
  %1065 = vmatpush2.bf16.msra.mxu0 0
  %1066 = vmatprep.subr.bf16.mxu0 0
  %1067 = vmatpush2.bf16.msra.mxu0 0
  %1068 = vmatprep.subr.bf16.mxu0 0
  %1069 = vmatpush2.bf16.msra.mxu0 0
  %1070 = vmatprep.subr.bf16.mxu0 0
  %1071 = vmatpush2.bf16.msra.mxu0 0
  %1072 = vmatprep.subr.bf16.mxu0 0
  %1073 = vmatpush2.bf16.msra.mxu0 0
  %1074 = vmatprep.subr.bf16.mxu0 0
  %1075 = vmatpush2.bf16.msra.mxu0 0
  %1076 = vmatprep.subr.bf16.mxu0 0
  %1077 = vmatpush2.bf16.msra.mxu0 0
  %1078 = vmatprep.mubr.bf16.mxu0 0
  %1079 = vmatmul.mubr.bf16.gmra.mxu0 %v1004
  %v1080 = vpop.f32.mrf.mxu0
  %v1081 = vadd.f32 0.0, %v1080
  %v1082 = vpop.f32.mrf.mxu0
  %v1083 = vadd.f32 0.0, %v1082
  %v1084 = vpop.f32.mrf.mxu0
  %v1085 = vpop.f32.mrf.mxu0
  %1086 = vdwg.mxu0
  %v1088 = vsel %vm311, %v1003, 0
  %1090 = vmatprep.subr.mxu0 0.0
  %1091 = vmatpush1.msra.mxu0 0.0
  %1092 = vmatprep.subr.mxu0 0.0
  %1093 = vmatpush1.msra.mxu0 0.0
  %1094 = vmatprep.subr.mxu0 0.0
  %1095 = vmatpush1.msra.mxu0 0.0
  %1096 = vmatprep.subr.mxu0 0.0
  %1097 = vmatpush1.msra.mxu0 0.0
  %1098 = vmatprep.subr.mxu0 0.0
  %1099 = vmatpush1.msra.mxu0 0.0
  %1100 = vmatprep.subr.mxu0 0.0
  %1101 = vmatpush1.msra.mxu0 0.0
  %1102 = vmatprep.subr.mxu0 0.0
  %1103 = vmatpush1.msra.mxu0 0.0
  %1104 = vmatprep.subr.mxu0 0.0
  %1105 = vmatpush1.msra.mxu0 0.0
  %1106 = vmatprep.subr.mxu0 0.0
  %1107 = vmatpush1.msra.mxu0 0.0
  %1108 = vmatprep.subr.mxu0 0.0
  %1109 = vmatpush1.msra.mxu0 0.0
  %1110 = vmatprep.subr.mxu0 0.0
  %1111 = vmatpush1.msra.mxu0 0.0
  %1112 = vmatprep.subr.mxu0 0.0
  %1113 = vmatpush1.msra.mxu0 0.0
  %1114 = vmatprep.subr.mxu0 0.0
  %1115 = vmatpush1.msra.mxu0 0.0
  %1116 = vmatprep.subr.mxu0 %v320
  %1117 = vmatpush1.msra.mxu0 %v317
  %1118 = vmatprep.subr.mxu0 %v26
  %1119 = vmatpush1.msra.mxu0 %v25
  %1120 = vmatprep.subr.mxu0 %v22
  %1121 = vmatpush1.msra.mxu0 %v21
  %1122 = vmatprep.subr.mxu0 0.0
  %1123 = vmatpush2.msra.mxu0 0.0
  %1124 = vmatprep.subr.mxu0 0.0
  %1125 = vmatpush2.msra.mxu0 0.0
  %1126 = vmatprep.subr.mxu0 0.0
  %1127 = vmatpush2.msra.mxu0 0.0
  %1128 = vmatprep.subr.mxu0 0.0
  %1129 = vmatpush2.msra.mxu0 0.0
  %1130 = vmatprep.subr.mxu0 0.0
  %1131 = vmatpush2.msra.mxu0 0.0
  %1132 = vmatprep.subr.mxu0 0.0
  %1133 = vmatpush2.msra.mxu0 0.0
  %1134 = vmatprep.subr.mxu0 0.0
  %1135 = vmatpush2.msra.mxu0 0.0
  %1136 = vmatprep.subr.mxu0 0.0
  %1137 = vmatpush2.msra.mxu0 0.0
  %1138 = vmatprep.subr.mxu0 0.0
  %1139 = vmatpush2.msra.mxu0 0.0
  %1140 = vmatprep.subr.mxu0 0.0
  %1141 = vmatpush2.msra.mxu0 0.0
  %1142 = vmatprep.subr.mxu0 0.0
  %1143 = vmatpush2.msra.mxu0 0.0
  %1144 = vmatprep.subr.mxu0 0.0
  %1145 = vmatpush2.msra.mxu0 0.0
  %1146 = vmatprep.subr.mxu0 0.0
  %1147 = vmatpush2.msra.mxu0 0.0
  %1148 = vmatprep.subr.mxu0 0.0
  %1149 = vmatpush2.msra.mxu0 0.0
  %1150 = vmatprep.subr.mxu0 0.0
  %1151 = vmatpush2.msra.mxu0 0.0
  %1152 = vmatprep.subr.mxu0 0.0
  %1153 = vmatpush2.msra.mxu0 0.0
  %1154 = vmatprep.mubr.f32.mxu0 0.0
  %1155 = vmatmul.mubr.f32.gmra.mxu0 %v1088
  %v1156 = vpop.f32.mrf.mxu0
  %v1157 = vadd.f32 %v1040, %v1156
  %v1158 = vpop.f32.mrf.mxu0
  %v1159 = vadd.f32 %v1042, %v1158
  %1160 = vdwg.mxu0
  %1161 = vmatprep.subr.mxu0 0.0
  %1162 = vmatpush1.msra.mxu0 0.0
  %1163 = vmatprep.subr.mxu0 0.0
  %1164 = vmatpush1.msra.mxu0 0.0
  %1165 = vmatprep.subr.mxu0 0.0
  %1166 = vmatpush1.msra.mxu0 0.0
  %1167 = vmatprep.subr.mxu0 0.0
  %1168 = vmatpush1.msra.mxu0 0.0
  %1169 = vmatprep.subr.mxu0 0.0
  %1170 = vmatpush1.msra.mxu0 0.0
  %1171 = vmatprep.subr.mxu0 0.0
  %1172 = vmatpush1.msra.mxu0 0.0
  %1173 = vmatprep.subr.mxu0 0.0
  %1174 = vmatpush1.msra.mxu0 0.0
  %1175 = vmatprep.subr.mxu0 0.0
  %1176 = vmatpush1.msra.mxu0 0.0
  %1177 = vmatprep.subr.mxu0 0.0
  %1178 = vmatpush1.msra.mxu0 0.0
  %1179 = vmatprep.subr.mxu0 0.0
  %1180 = vmatpush1.msra.mxu0 0.0
  %1181 = vmatprep.subr.mxu0 0.0
  %1182 = vmatpush1.msra.mxu0 0.0
  %1183 = vmatprep.subr.mxu0 0.0
  %1184 = vmatpush1.msra.mxu0 0.0
  %1185 = vmatprep.subr.mxu0 0.0
  %1186 = vmatpush1.msra.mxu0 0.0
  %1187 = vmatprep.subr.mxu0 %v326
  %1188 = vmatpush1.msra.mxu0 %v323
  %1189 = vmatprep.subr.mxu0 %v28
  %1190 = vmatpush1.msra.mxu0 %v27
  %1191 = vmatprep.subr.mxu0 %v24
  %1192 = vmatpush1.msra.mxu0 %v23
  %1193 = vmatprep.subr.mxu0 0.0
  %1194 = vmatpush2.msra.mxu0 0.0
  %1195 = vmatprep.subr.mxu0 0.0
  %1196 = vmatpush2.msra.mxu0 0.0
  %1197 = vmatprep.subr.mxu0 0.0
  %1198 = vmatpush2.msra.mxu0 0.0
  %1199 = vmatprep.subr.mxu0 0.0
  %1200 = vmatpush2.msra.mxu0 0.0
  %1201 = vmatprep.subr.mxu0 0.0
  %1202 = vmatpush2.msra.mxu0 0.0
  %1203 = vmatprep.subr.mxu0 0.0
  %1204 = vmatpush2.msra.mxu0 0.0
  %1205 = vmatprep.subr.mxu0 0.0
  %1206 = vmatpush2.msra.mxu0 0.0
  %1207 = vmatprep.subr.mxu0 0.0
  %1208 = vmatpush2.msra.mxu0 0.0
  %1209 = vmatprep.subr.mxu0 0.0
  %1210 = vmatpush2.msra.mxu0 0.0
  %1211 = vmatprep.subr.mxu0 0.0
  %1212 = vmatpush2.msra.mxu0 0.0
  %1213 = vmatprep.subr.mxu0 0.0
  %1214 = vmatpush2.msra.mxu0 0.0
  %1215 = vmatprep.subr.mxu0 0.0
  %1216 = vmatpush2.msra.mxu0 0.0
  %1217 = vmatprep.subr.mxu0 0.0
  %1218 = vmatpush2.msra.mxu0 0.0
  %1219 = vmatprep.subr.mxu0 0.0
  %1220 = vmatpush2.msra.mxu0 0.0
  %1221 = vmatprep.subr.mxu0 0.0
  %1222 = vmatpush2.msra.mxu0 0.0
  %1223 = vmatprep.subr.mxu0 0.0
  %1224 = vmatpush2.msra.mxu0 0.0
  %1225 = vmatprep.mubr.f32.mxu0 0.0
  %1226 = vmatmul.mubr.f32.gmra.mxu0 %v1088
  %v1227 = vpop.f32.mrf.mxu0
  %v1228 = vadd.f32 %v1081, %v1227
  %v1229 = vpop.f32.mrf.mxu0
  %v1230 = vadd.f32 %v1083, %v1229
  %1231 = vdwg.mxu0
  %v1232 = vxor.u32 %v1157, 2147483648
  %v1233 = vxor.u32 %v1159, 2147483648
  %v1234 = vxor.u32 %v1228, 2147483648
  %v1235 = vmul.f32 %v1232, 1.442695
  %v1236 = vpow.pop %v1235
  %v1237 = vmul.f32 %v1233, 1.442695
  %v1238 = vpow.pop %v1237
  %v1239 = vmul.f32 %v1234, 1.442695
  %v1240 = vpow.pop %v1239
  %v1241 = vadd.f32 %v1236, 1.0
  %v1242 = vadd.f32 %v1238, 1.0
  %v1243 = vadd.f32 %v1240, 1.0
  %v1244 = vrcp.pop %v1241
  %v1245 = vmul.f32 1.0, %v1244
  %v1246 = vrcp.pop %v1242
  %v1247 = vmul.f32 1.0, %v1246
  %v1248 = vrcp.pop %v1243
  %v1249 = vmul.f32 1.0, %v1248
  %v1250 = vtanh.pop %v1230
  %v1251 = vmul.f32 %v1247, %v999
  %v1252 = vmul.f32 %v1245, %v1250
  %v1253 = vadd.f32 %v1251, %v1252
  %v1254 = vtanh.pop %v1253
  %v1255 = vmul.f32 %v1249, %v1254
  %s1256 = scalar_lea.vmem %s0, 32
  %v1257 = vld [vmem:[%s1256] sm:$0xff]
  %v1258 = vpack.c.bf16 %v1255, %v1255
  %1259 = vmatprep.subr.bf16.mxu0 %v194
  %1260 = vmatpush1.bf16.msra.mxu0 %v193
  %1261 = vmatprep.subr.bf16.mxu0 %v190
  %1262 = vmatpush1.bf16.msra.mxu0 %v189
  %1263 = vmatprep.subr.bf16.mxu0 %v186
  %1264 = vmatpush1.bf16.msra.mxu0 %v185
  %1265 = vmatprep.subr.bf16.mxu0 %v182
  %1266 = vmatpush1.bf16.msra.mxu0 %v181
  %1267 = vmatprep.subr.bf16.mxu0 %v178
  %1268 = vmatpush1.bf16.msra.mxu0 %v177
  %1269 = vmatprep.subr.bf16.mxu0 %v174
  %1270 = vmatpush1.bf16.msra.mxu0 %v173
  %1271 = vmatprep.subr.bf16.mxu0 %v170
  %1272 = vmatpush1.bf16.msra.mxu0 %v169
  %1273 = vmatprep.subr.bf16.mxu0 %v166
  %1274 = vmatpush1.bf16.msra.mxu0 %v165
  %1275 = vmatprep.subr.bf16.mxu0 0
  %1276 = vmatpush2.bf16.msra.mxu0 0
  %1277 = vmatprep.subr.bf16.mxu0 0
  %1278 = vmatpush2.bf16.msra.mxu0 0
  %1279 = vmatprep.subr.bf16.mxu0 0
  %1280 = vmatpush2.bf16.msra.mxu0 0
  %1281 = vmatprep.subr.bf16.mxu0 0
  %1282 = vmatpush2.bf16.msra.mxu0 0
  %1283 = vmatprep.subr.bf16.mxu0 0
  %1284 = vmatpush2.bf16.msra.mxu0 0
  %1285 = vmatprep.subr.bf16.mxu0 0
  %1286 = vmatpush2.bf16.msra.mxu0 0
  %1287 = vmatprep.subr.bf16.mxu0 0
  %1288 = vmatpush2.bf16.msra.mxu0 0
  %1289 = vmatprep.subr.bf16.mxu0 0
  %1290 = vmatpush2.bf16.msra.mxu0 0
  %1291 = vmatprep.mubr.bf16.mxu0 0
  %1292 = vmatmul.mubr.bf16.gmra.mxu0 %v1258
  %v1293 = vpop.f32.mrf.mxu0
  %v1294 = vadd.f32 0.0, %v1293
  %v1295 = vpop.f32.mrf.mxu0
  %v1296 = vadd.f32 0.0, %v1295
  %v1297 = vpop.f32.mrf.mxu0
  %v1298 = vpop.f32.mrf.mxu0
  %1299 = vdwg.mxu0
  %1300 = vmatprep.subr.bf16.mxu0 %v196
  %1301 = vmatpush1.bf16.msra.mxu0 %v195
  %1302 = vmatprep.subr.bf16.mxu0 %v192
  %1303 = vmatpush1.bf16.msra.mxu0 %v191
  %1304 = vmatprep.subr.bf16.mxu0 %v188
  %1305 = vmatpush1.bf16.msra.mxu0 %v187
  %1306 = vmatprep.subr.bf16.mxu0 %v184
  %1307 = vmatpush1.bf16.msra.mxu0 %v183
  %1308 = vmatprep.subr.bf16.mxu0 %v180
  %1309 = vmatpush1.bf16.msra.mxu0 %v179
  %1310 = vmatprep.subr.bf16.mxu0 %v176
  %1311 = vmatpush1.bf16.msra.mxu0 %v175
  %1312 = vmatprep.subr.bf16.mxu0 %v172
  %1313 = vmatpush1.bf16.msra.mxu0 %v171
  %1314 = vmatprep.subr.bf16.mxu0 %v168
  %1315 = vmatpush1.bf16.msra.mxu0 %v167
  %1316 = vmatprep.subr.bf16.mxu0 0
  %1317 = vmatpush2.bf16.msra.mxu0 0
  %1318 = vmatprep.subr.bf16.mxu0 0
  %1319 = vmatpush2.bf16.msra.mxu0 0
  %1320 = vmatprep.subr.bf16.mxu0 0
  %1321 = vmatpush2.bf16.msra.mxu0 0
  %1322 = vmatprep.subr.bf16.mxu0 0
  %1323 = vmatpush2.bf16.msra.mxu0 0
  %1324 = vmatprep.subr.bf16.mxu0 0
  %1325 = vmatpush2.bf16.msra.mxu0 0
  %1326 = vmatprep.subr.bf16.mxu0 0
  %1327 = vmatpush2.bf16.msra.mxu0 0
  %1328 = vmatprep.subr.bf16.mxu0 0
  %1329 = vmatpush2.bf16.msra.mxu0 0
  %1330 = vmatprep.subr.bf16.mxu0 0
  %1331 = vmatpush2.bf16.msra.mxu0 0
  %1332 = vmatprep.mubr.bf16.mxu0 0
  %1333 = vmatmul.mubr.bf16.gmra.mxu0 %v1258
  %v1334 = vpop.f32.mrf.mxu0
  %v1335 = vadd.f32 0.0, %v1334
  %v1336 = vpop.f32.mrf.mxu0
  %v1337 = vadd.f32 0.0, %v1336
  %v1338 = vpop.f32.mrf.mxu0
  %v1339 = vpop.f32.mrf.mxu0
  %1340 = vdwg.mxu0
  %v1342 = vsel %vm311, %v1257, 0
  %1344 = vmatprep.subr.mxu0 0.0
  %1345 = vmatpush1.msra.mxu0 0.0
  %1346 = vmatprep.subr.mxu0 0.0
  %1347 = vmatpush1.msra.mxu0 0.0
  %1348 = vmatprep.subr.mxu0 0.0
  %1349 = vmatpush1.msra.mxu0 0.0
  %1350 = vmatprep.subr.mxu0 0.0
  %1351 = vmatpush1.msra.mxu0 0.0
  %1352 = vmatprep.subr.mxu0 0.0
  %1353 = vmatpush1.msra.mxu0 0.0
  %1354 = vmatprep.subr.mxu0 0.0
  %1355 = vmatpush1.msra.mxu0 0.0
  %1356 = vmatprep.subr.mxu0 0.0
  %1357 = vmatpush1.msra.mxu0 0.0
  %1358 = vmatprep.subr.mxu0 0.0
  %1359 = vmatpush1.msra.mxu0 0.0
  %1360 = vmatprep.subr.mxu0 0.0
  %1361 = vmatpush1.msra.mxu0 0.0
  %1362 = vmatprep.subr.mxu0 0.0
  %1363 = vmatpush1.msra.mxu0 0.0
  %1364 = vmatprep.subr.mxu0 0.0
  %1365 = vmatpush1.msra.mxu0 0.0
  %1366 = vmatprep.subr.mxu0 0.0
  %1367 = vmatpush1.msra.mxu0 0.0
  %1368 = vmatprep.subr.mxu0 0.0
  %1369 = vmatpush1.msra.mxu0 0.0
  %1370 = vmatprep.subr.mxu0 %v320
  %1371 = vmatpush1.msra.mxu0 %v317
  %1372 = vmatprep.subr.mxu0 %v26
  %1373 = vmatpush1.msra.mxu0 %v25
  %1374 = vmatprep.subr.mxu0 %v22
  %1375 = vmatpush1.msra.mxu0 %v21
  %1376 = vmatprep.subr.mxu0 0.0
  %1377 = vmatpush2.msra.mxu0 0.0
  %1378 = vmatprep.subr.mxu0 0.0
  %1379 = vmatpush2.msra.mxu0 0.0
  %1380 = vmatprep.subr.mxu0 0.0
  %1381 = vmatpush2.msra.mxu0 0.0
  %1382 = vmatprep.subr.mxu0 0.0
  %1383 = vmatpush2.msra.mxu0 0.0
  %1384 = vmatprep.subr.mxu0 0.0
  %1385 = vmatpush2.msra.mxu0 0.0
  %1386 = vmatprep.subr.mxu0 0.0
  %1387 = vmatpush2.msra.mxu0 0.0
  %1388 = vmatprep.subr.mxu0 0.0
  %1389 = vmatpush2.msra.mxu0 0.0
  %1390 = vmatprep.subr.mxu0 0.0
  %1391 = vmatpush2.msra.mxu0 0.0
  %1392 = vmatprep.subr.mxu0 0.0
  %1393 = vmatpush2.msra.mxu0 0.0
  %1394 = vmatprep.subr.mxu0 0.0
  %1395 = vmatpush2.msra.mxu0 0.0
  %1396 = vmatprep.subr.mxu0 0.0
  %1397 = vmatpush2.msra.mxu0 0.0
  %1398 = vmatprep.subr.mxu0 0.0
  %1399 = vmatpush2.msra.mxu0 0.0
  %1400 = vmatprep.subr.mxu0 0.0
  %1401 = vmatpush2.msra.mxu0 0.0
  %1402 = vmatprep.subr.mxu0 0.0
  %1403 = vmatpush2.msra.mxu0 0.0
  %1404 = vmatprep.subr.mxu0 0.0
  %1405 = vmatpush2.msra.mxu0 0.0
  %1406 = vmatprep.subr.mxu0 0.0
  %1407 = vmatpush2.msra.mxu0 0.0
  %1408 = vmatprep.mubr.f32.mxu0 0.0
  %1409 = vmatmul.mubr.f32.gmra.mxu0 %v1342
  %v1410 = vpop.f32.mrf.mxu0
  %v1411 = vadd.f32 %v1294, %v1410
  %v1412 = vpop.f32.mrf.mxu0
  %v1413 = vadd.f32 %v1296, %v1412
  %1414 = vdwg.mxu0
  %1415 = vmatprep.subr.mxu0 0.0
  %1416 = vmatpush1.msra.mxu0 0.0
  %1417 = vmatprep.subr.mxu0 0.0
  %1418 = vmatpush1.msra.mxu0 0.0
  %1419 = vmatprep.subr.mxu0 0.0
  %1420 = vmatpush1.msra.mxu0 0.0
  %1421 = vmatprep.subr.mxu0 0.0
  %1422 = vmatpush1.msra.mxu0 0.0
  %1423 = vmatprep.subr.mxu0 0.0
  %1424 = vmatpush1.msra.mxu0 0.0
  %1425 = vmatprep.subr.mxu0 0.0
  %1426 = vmatpush1.msra.mxu0 0.0
  %1427 = vmatprep.subr.mxu0 0.0
  %1428 = vmatpush1.msra.mxu0 0.0
  %1429 = vmatprep.subr.mxu0 0.0
  %1430 = vmatpush1.msra.mxu0 0.0
  %1431 = vmatprep.subr.mxu0 0.0
  %1432 = vmatpush1.msra.mxu0 0.0
  %1433 = vmatprep.subr.mxu0 0.0
  %1434 = vmatpush1.msra.mxu0 0.0
  %1435 = vmatprep.subr.mxu0 0.0
  %1436 = vmatpush1.msra.mxu0 0.0
  %1437 = vmatprep.subr.mxu0 0.0
  %1438 = vmatpush1.msra.mxu0 0.0
  %1439 = vmatprep.subr.mxu0 0.0
  %1440 = vmatpush1.msra.mxu0 0.0
  %1441 = vmatprep.subr.mxu0 %v326
  %1442 = vmatpush1.msra.mxu0 %v323
  %1443 = vmatprep.subr.mxu0 %v28
  %1444 = vmatpush1.msra.mxu0 %v27
  %1445 = vmatprep.subr.mxu0 %v24
  %1446 = vmatpush1.msra.mxu0 %v23
  %1447 = vmatprep.subr.mxu0 0.0
  %1448 = vmatpush2.msra.mxu0 0.0
  %1449 = vmatprep.subr.mxu0 0.0
  %1450 = vmatpush2.msra.mxu0 0.0
  %1451 = vmatprep.subr.mxu0 0.0
  %1452 = vmatpush2.msra.mxu0 0.0
  %1453 = vmatprep.subr.mxu0 0.0
  %1454 = vmatpush2.msra.mxu0 0.0
  %1455 = vmatprep.subr.mxu0 0.0
  %1456 = vmatpush2.msra.mxu0 0.0
  %1457 = vmatprep.subr.mxu0 0.0
  %1458 = vmatpush2.msra.mxu0 0.0
  %1459 = vmatprep.subr.mxu0 0.0
  %1460 = vmatpush2.msra.mxu0 0.0
  %1461 = vmatprep.subr.mxu0 0.0
  %1462 = vmatpush2.msra.mxu0 0.0
  %1463 = vmatprep.subr.mxu0 0.0
  %1464 = vmatpush2.msra.mxu0 0.0
  %1465 = vmatprep.subr.mxu0 0.0
  %1466 = vmatpush2.msra.mxu0 0.0
  %1467 = vmatprep.subr.mxu0 0.0
  %1468 = vmatpush2.msra.mxu0 0.0
  %1469 = vmatprep.subr.mxu0 0.0
  %1470 = vmatpush2.msra.mxu0 0.0
  %1471 = vmatprep.subr.mxu0 0.0
  %1472 = vmatpush2.msra.mxu0 0.0
  %1473 = vmatprep.subr.mxu0 0.0
  %1474 = vmatpush2.msra.mxu0 0.0
  %1475 = vmatprep.subr.mxu0 0.0
  %1476 = vmatpush2.msra.mxu0 0.0
  %1477 = vmatprep.subr.mxu0 0.0
  %1478 = vmatpush2.msra.mxu0 0.0
  %1479 = vmatprep.mubr.f32.mxu0 0.0
  %1480 = vmatmul.mubr.f32.gmra.mxu0 %v1342
  %v1481 = vpop.f32.mrf.mxu0
  %v1482 = vadd.f32 %v1335, %v1481
  %v1483 = vpop.f32.mrf.mxu0
  %v1484 = vadd.f32 %v1337, %v1483
  %1485 = vdwg.mxu0
  %v1486 = vxor.u32 %v1411, 2147483648
  %v1487 = vxor.u32 %v1413, 2147483648
  %v1488 = vxor.u32 %v1482, 2147483648
  %v1489 = vmul.f32 %v1486, 1.442695
  %v1490 = vpow.pop %v1489
  %v1491 = vmul.f32 %v1487, 1.442695
  %v1492 = vpow.pop %v1491
  %v1493 = vmul.f32 %v1488, 1.442695
  %v1494 = vpow.pop %v1493
  %v1495 = vadd.f32 %v1490, 1.0
  %v1496 = vadd.f32 %v1492, 1.0
  %v1497 = vadd.f32 %v1494, 1.0
  %v1498 = vrcp.pop %v1495
  %v1499 = vmul.f32 1.0, %v1498
  %v1500 = vrcp.pop %v1496
  %v1501 = vmul.f32 1.0, %v1500
  %v1502 = vrcp.pop %v1497
  %v1503 = vmul.f32 1.0, %v1502
  %v1504 = vtanh.pop %v1484
  %v1505 = vmul.f32 %v1501, %v1253
  %v1506 = vmul.f32 %v1499, %v1504
  %v1507 = vadd.f32 %v1505, %v1506
  %v1508 = vtanh.pop %v1507
  %v1509 = vmul.f32 %v1503, %v1508
  %s1510 = scalar_lea.vmem %s0, 40
  %v1511 = vld [vmem:[%s1510] sm:$0xff]
  %v1512 = vpack.c.bf16 %v1509, %v1509
  %1513 = vmatprep.subr.bf16.mxu0 %v194
  %1514 = vmatpush1.bf16.msra.mxu0 %v193
  %1515 = vmatprep.subr.bf16.mxu0 %v190
  %1516 = vmatpush1.bf16.msra.mxu0 %v189
  %1517 = vmatprep.subr.bf16.mxu0 %v186
  %1518 = vmatpush1.bf16.msra.mxu0 %v185
  %1519 = vmatprep.subr.bf16.mxu0 %v182
  %1520 = vmatpush1.bf16.msra.mxu0 %v181
  %1521 = vmatprep.subr.bf16.mxu0 %v178
  %1522 = vmatpush1.bf16.msra.mxu0 %v177
  %1523 = vmatprep.subr.bf16.mxu0 %v174
  %1524 = vmatpush1.bf16.msra.mxu0 %v173
  %1525 = vmatprep.subr.bf16.mxu0 %v170
  %1526 = vmatpush1.bf16.msra.mxu0 %v169
  %1527 = vmatprep.subr.bf16.mxu0 %v166
  %1528 = vmatpush1.bf16.msra.mxu0 %v165
  %1529 = vmatprep.subr.bf16.mxu0 0
  %1530 = vmatpush2.bf16.msra.mxu0 0
  %1531 = vmatprep.subr.bf16.mxu0 0
  %1532 = vmatpush2.bf16.msra.mxu0 0
  %1533 = vmatprep.subr.bf16.mxu0 0
  %1534 = vmatpush2.bf16.msra.mxu0 0
  %1535 = vmatprep.subr.bf16.mxu0 0
  %1536 = vmatpush2.bf16.msra.mxu0 0
  %1537 = vmatprep.subr.bf16.mxu0 0
  %1538 = vmatpush2.bf16.msra.mxu0 0
  %1539 = vmatprep.subr.bf16.mxu0 0
  %1540 = vmatpush2.bf16.msra.mxu0 0
  %1541 = vmatprep.subr.bf16.mxu0 0
  %1542 = vmatpush2.bf16.msra.mxu0 0
  %1543 = vmatprep.subr.bf16.mxu0 0
  %1544 = vmatpush2.bf16.msra.mxu0 0
  %1545 = vmatprep.mubr.bf16.mxu0 0
  %1546 = vmatmul.mubr.bf16.gmra.mxu0 %v1512
  %v1547 = vpop.f32.mrf.mxu0
  %v1548 = vadd.f32 0.0, %v1547
  %v1549 = vpop.f32.mrf.mxu0
  %v1550 = vadd.f32 0.0, %v1549
  %v1551 = vpop.f32.mrf.mxu0
  %v1552 = vpop.f32.mrf.mxu0
  %1553 = vdwg.mxu0
  %1554 = vmatprep.subr.bf16.mxu0 %v196
  %1555 = vmatpush1.bf16.msra.mxu0 %v195
  %1556 = vmatprep.subr.bf16.mxu0 %v192
  %1557 = vmatpush1.bf16.msra.mxu0 %v191
  %1558 = vmatprep.subr.bf16.mxu0 %v188
  %1559 = vmatpush1.bf16.msra.mxu0 %v187
  %1560 = vmatprep.subr.bf16.mxu0 %v184
  %1561 = vmatpush1.bf16.msra.mxu0 %v183
  %1562 = vmatprep.subr.bf16.mxu0 %v180
  %1563 = vmatpush1.bf16.msra.mxu0 %v179
  %1564 = vmatprep.subr.bf16.mxu0 %v176
  %1565 = vmatpush1.bf16.msra.mxu0 %v175
  %1566 = vmatprep.subr.bf16.mxu0 %v172
  %1567 = vmatpush1.bf16.msra.mxu0 %v171
  %1568 = vmatprep.subr.bf16.mxu0 %v168
  %1569 = vmatpush1.bf16.msra.mxu0 %v167
  %1570 = vmatprep.subr.bf16.mxu0 0
  %1571 = vmatpush2.bf16.msra.mxu0 0
  %1572 = vmatprep.subr.bf16.mxu0 0
  %1573 = vmatpush2.bf16.msra.mxu0 0
  %1574 = vmatprep.subr.bf16.mxu0 0
  %1575 = vmatpush2.bf16.msra.mxu0 0
  %1576 = vmatprep.subr.bf16.mxu0 0
  %1577 = vmatpush2.bf16.msra.mxu0 0
  %1578 = vmatprep.subr.bf16.mxu0 0
  %1579 = vmatpush2.bf16.msra.mxu0 0
  %1580 = vmatprep.subr.bf16.mxu0 0
  %1581 = vmatpush2.bf16.msra.mxu0 0
  %1582 = vmatprep.subr.bf16.mxu0 0
  %1583 = vmatpush2.bf16.msra.mxu0 0
  %1584 = vmatprep.subr.bf16.mxu0 0
  %1585 = vmatpush2.bf16.msra.mxu0 0
  %1586 = vmatprep.mubr.bf16.mxu0 0
  %1587 = vmatmul.mubr.bf16.gmra.mxu0 %v1512
  %v1588 = vpop.f32.mrf.mxu0
  %v1589 = vadd.f32 0.0, %v1588
  %v1590 = vpop.f32.mrf.mxu0
  %v1591 = vadd.f32 0.0, %v1590
  %v1592 = vpop.f32.mrf.mxu0
  %v1593 = vpop.f32.mrf.mxu0
  %1594 = vdwg.mxu0
  %v1596 = vsel %vm311, %v1511, 0
  %1598 = vmatprep.subr.mxu0 0.0
  %1599 = vmatpush1.msra.mxu0 0.0
  %1600 = vmatprep.subr.mxu0 0.0
  %1601 = vmatpush1.msra.mxu0 0.0
  %1602 = vmatprep.subr.mxu0 0.0
  %1603 = vmatpush1.msra.mxu0 0.0
  %1604 = vmatprep.subr.mxu0 0.0
  %1605 = vmatpush1.msra.mxu0 0.0
  %1606 = vmatprep.subr.mxu0 0.0
  %1607 = vmatpush1.msra.mxu0 0.0
  %1608 = vmatprep.subr.mxu0 0.0
  %1609 = vmatpush1.msra.mxu0 0.0
  %1610 = vmatprep.subr.mxu0 0.0
  %1611 = vmatpush1.msra.mxu0 0.0
  %1612 = vmatprep.subr.mxu0 0.0
  %1613 = vmatpush1.msra.mxu0 0.0
  %1614 = vmatprep.subr.mxu0 0.0
  %1615 = vmatpush1.msra.mxu0 0.0
  %1616 = vmatprep.subr.mxu0 0.0
  %1617 = vmatpush1.msra.mxu0 0.0
  %1618 = vmatprep.subr.mxu0 0.0
  %1619 = vmatpush1.msra.mxu0 0.0
  %1620 = vmatprep.subr.mxu0 0.0
  %1621 = vmatpush1.msra.mxu0 0.0
  %1622 = vmatprep.subr.mxu0 0.0
  %1623 = vmatpush1.msra.mxu0 0.0
  %1624 = vmatprep.subr.mxu0 %v320
  %1625 = vmatpush1.msra.mxu0 %v317
  %1626 = vmatprep.subr.mxu0 %v26
  %1627 = vmatpush1.msra.mxu0 %v25
  %1628 = vmatprep.subr.mxu0 %v22
  %1629 = vmatpush1.msra.mxu0 %v21
  %1630 = vmatprep.subr.mxu0 0.0
  %1631 = vmatpush2.msra.mxu0 0.0
  %1632 = vmatprep.subr.mxu0 0.0
  %1633 = vmatpush2.msra.mxu0 0.0
  %1634 = vmatprep.subr.mxu0 0.0
  %1635 = vmatpush2.msra.mxu0 0.0
  %1636 = vmatprep.subr.mxu0 0.0
  %1637 = vmatpush2.msra.mxu0 0.0
  %1638 = vmatprep.subr.mxu0 0.0
  %1639 = vmatpush2.msra.mxu0 0.0
  %1640 = vmatprep.subr.mxu0 0.0
  %1641 = vmatpush2.msra.mxu0 0.0
  %1642 = vmatprep.subr.mxu0 0.0
  %1643 = vmatpush2.msra.mxu0 0.0
  %1644 = vmatprep.subr.mxu0 0.0
  %1645 = vmatpush2.msra.mxu0 0.0
  %1646 = vmatprep.subr.mxu0 0.0
  %1647 = vmatpush2.msra.mxu0 0.0
  %1648 = vmatprep.subr.mxu0 0.0
  %1649 = vmatpush2.msra.mxu0 0.0
  %1650 = vmatprep.subr.mxu0 0.0
  %1651 = vmatpush2.msra.mxu0 0.0
  %1652 = vmatprep.subr.mxu0 0.0
  %1653 = vmatpush2.msra.mxu0 0.0
  %1654 = vmatprep.subr.mxu0 0.0
  %1655 = vmatpush2.msra.mxu0 0.0
  %1656 = vmatprep.subr.mxu0 0.0
  %1657 = vmatpush2.msra.mxu0 0.0
  %1658 = vmatprep.subr.mxu0 0.0
  %1659 = vmatpush2.msra.mxu0 0.0
  %1660 = vmatprep.subr.mxu0 0.0
  %1661 = vmatpush2.msra.mxu0 0.0
  %1662 = vmatprep.mubr.f32.mxu0 0.0
  %1663 = vmatmul.mubr.f32.gmra.mxu0 %v1596
  %v1664 = vpop.f32.mrf.mxu0
  %v1665 = vadd.f32 %v1548, %v1664
  %v1666 = vpop.f32.mrf.mxu0
  %v1667 = vadd.f32 %v1550, %v1666
  %1668 = vdwg.mxu0
  %1669 = vmatprep.subr.mxu0 0.0
  %1670 = vmatpush1.msra.mxu0 0.0
  %1671 = vmatprep.subr.mxu0 0.0
  %1672 = vmatpush1.msra.mxu0 0.0
  %1673 = vmatprep.subr.mxu0 0.0
  %1674 = vmatpush1.msra.mxu0 0.0
  %1675 = vmatprep.subr.mxu0 0.0
  %1676 = vmatpush1.msra.mxu0 0.0
  %1677 = vmatprep.subr.mxu0 0.0
  %1678 = vmatpush1.msra.mxu0 0.0
  %1679 = vmatprep.subr.mxu0 0.0
  %1680 = vmatpush1.msra.mxu0 0.0
  %1681 = vmatprep.subr.mxu0 0.0
  %1682 = vmatpush1.msra.mxu0 0.0
  %1683 = vmatprep.subr.mxu0 0.0
  %1684 = vmatpush1.msra.mxu0 0.0
  %1685 = vmatprep.subr.mxu0 0.0
  %1686 = vmatpush1.msra.mxu0 0.0
  %1687 = vmatprep.subr.mxu0 0.0
  %1688 = vmatpush1.msra.mxu0 0.0
  %1689 = vmatprep.subr.mxu0 0.0
  %1690 = vmatpush1.msra.mxu0 0.0
  %1691 = vmatprep.subr.mxu0 0.0
  %1692 = vmatpush1.msra.mxu0 0.0
  %1693 = vmatprep.subr.mxu0 0.0
  %1694 = vmatpush1.msra.mxu0 0.0
  %1695 = vmatprep.subr.mxu0 %v326
  %1696 = vmatpush1.msra.mxu0 %v323
  %1697 = vmatprep.subr.mxu0 %v28
  %1698 = vmatpush1.msra.mxu0 %v27
  %1699 = vmatprep.subr.mxu0 %v24
  %1700 = vmatpush1.msra.mxu0 %v23
  %1701 = vmatprep.subr.mxu0 0.0
  %1702 = vmatpush2.msra.mxu0 0.0
  %1703 = vmatprep.subr.mxu0 0.0
  %1704 = vmatpush2.msra.mxu0 0.0
  %1705 = vmatprep.subr.mxu0 0.0
  %1706 = vmatpush2.msra.mxu0 0.0
  %1707 = vmatprep.subr.mxu0 0.0
  %1708 = vmatpush2.msra.mxu0 0.0
  %1709 = vmatprep.subr.mxu0 0.0
  %1710 = vmatpush2.msra.mxu0 0.0
  %1711 = vmatprep.subr.mxu0 0.0
  %1712 = vmatpush2.msra.mxu0 0.0
  %1713 = vmatprep.subr.mxu0 0.0
  %1714 = vmatpush2.msra.mxu0 0.0
  %1715 = vmatprep.subr.mxu0 0.0
  %1716 = vmatpush2.msra.mxu0 0.0
  %1717 = vmatprep.subr.mxu0 0.0
  %1718 = vmatpush2.msra.mxu0 0.0
  %1719 = vmatprep.subr.mxu0 0.0
  %1720 = vmatpush2.msra.mxu0 0.0
  %1721 = vmatprep.subr.mxu0 0.0
  %1722 = vmatpush2.msra.mxu0 0.0
  %1723 = vmatprep.subr.mxu0 0.0
  %1724 = vmatpush2.msra.mxu0 0.0
  %1725 = vmatprep.subr.mxu0 0.0
  %1726 = vmatpush2.msra.mxu0 0.0
  %1727 = vmatprep.subr.mxu0 0.0
  %1728 = vmatpush2.msra.mxu0 0.0
  %1729 = vmatprep.subr.mxu0 0.0
  %1730 = vmatpush2.msra.mxu0 0.0
  %1731 = vmatprep.subr.mxu0 0.0
  %1732 = vmatpush2.msra.mxu0 0.0
  %1733 = vmatprep.mubr.f32.mxu0 0.0
  %1734 = vmatmul.mubr.f32.gmra.mxu0 %v1596
  %v1735 = vpop.f32.mrf.mxu0
  %v1736 = vadd.f32 %v1589, %v1735
  %v1737 = vpop.f32.mrf.mxu0
  %v1738 = vadd.f32 %v1591, %v1737
  %1739 = vdwg.mxu0
  %v1740 = vxor.u32 %v1665, 2147483648
  %v1741 = vxor.u32 %v1667, 2147483648
  %v1742 = vxor.u32 %v1736, 2147483648
  %v1743 = vmul.f32 %v1740, 1.442695
  %v1744 = vpow.pop %v1743
  %v1745 = vmul.f32 %v1741, 1.442695
  %v1746 = vpow.pop %v1745
  %v1747 = vmul.f32 %v1742, 1.442695
  %v1748 = vpow.pop %v1747
  %v1749 = vadd.f32 %v1744, 1.0
  %v1750 = vadd.f32 %v1746, 1.0
  %v1751 = vadd.f32 %v1748, 1.0
  %v1752 = vrcp.pop %v1749
  %v1753 = vmul.f32 1.0, %v1752
  %v1754 = vrcp.pop %v1750
  %v1755 = vmul.f32 1.0, %v1754
  %v1756 = vrcp.pop %v1751
  %v1757 = vmul.f32 1.0, %v1756
  %v1758 = vtanh.pop %v1738
  %v1759 = vmul.f32 %v1755, %v1507
  %v1760 = vmul.f32 %v1753, %v1758
  %v1761 = vadd.f32 %v1759, %v1760
  %v1762 = vtanh.pop %v1761
  %v1763 = vmul.f32 %v1757, %v1762
  %s1764 = scalar_lea.vmem %s0, 48
  %v1765 = vld [vmem:[%s1764] sm:$0xff]
  %v1766 = vpack.c.bf16 %v1763, %v1763
  %1767 = vmatprep.subr.bf16.mxu0 %v194
  %1768 = vmatpush1.bf16.msra.mxu0 %v193
  %1769 = vmatprep.subr.bf16.mxu0 %v190
  %1770 = vmatpush1.bf16.msra.mxu0 %v189
  %1771 = vmatprep.subr.bf16.mxu0 %v186
  %1772 = vmatpush1.bf16.msra.mxu0 %v185
  %1773 = vmatprep.subr.bf16.mxu0 %v182
  %1774 = vmatpush1.bf16.msra.mxu0 %v181
  %1775 = vmatprep.subr.bf16.mxu0 %v178
  %1776 = vmatpush1.bf16.msra.mxu0 %v177
  %1777 = vmatprep.subr.bf16.mxu0 %v174
  %1778 = vmatpush1.bf16.msra.mxu0 %v173
  %1779 = vmatprep.subr.bf16.mxu0 %v170
  %1780 = vmatpush1.bf16.msra.mxu0 %v169
  %1781 = vmatprep.subr.bf16.mxu0 %v166
  %1782 = vmatpush1.bf16.msra.mxu0 %v165
  %1783 = vmatprep.subr.bf16.mxu0 0
  %1784 = vmatpush2.bf16.msra.mxu0 0
  %1785 = vmatprep.subr.bf16.mxu0 0
  %1786 = vmatpush2.bf16.msra.mxu0 0
  %1787 = vmatprep.subr.bf16.mxu0 0
  %1788 = vmatpush2.bf16.msra.mxu0 0
  %1789 = vmatprep.subr.bf16.mxu0 0
  %1790 = vmatpush2.bf16.msra.mxu0 0
  %1791 = vmatprep.subr.bf16.mxu0 0
  %1792 = vmatpush2.bf16.msra.mxu0 0
  %1793 = vmatprep.subr.bf16.mxu0 0
  %1794 = vmatpush2.bf16.msra.mxu0 0
  %1795 = vmatprep.subr.bf16.mxu0 0
  %1796 = vmatpush2.bf16.msra.mxu0 0
  %1797 = vmatprep.subr.bf16.mxu0 0
  %1798 = vmatpush2.bf16.msra.mxu0 0
  %1799 = vmatprep.mubr.bf16.mxu0 0
  %1800 = vmatmul.mubr.bf16.gmra.mxu0 %v1766
  %v1801 = vpop.f32.mrf.mxu0
  %v1802 = vadd.f32 0.0, %v1801
  %v1803 = vpop.f32.mrf.mxu0
  %v1804 = vadd.f32 0.0, %v1803
  %v1805 = vpop.f32.mrf.mxu0
  %v1806 = vpop.f32.mrf.mxu0
  %1807 = vdwg.mxu0
  %1808 = vmatprep.subr.bf16.mxu0 %v196
  %1809 = vmatpush1.bf16.msra.mxu0 %v195
  %1810 = vmatprep.subr.bf16.mxu0 %v192
  %1811 = vmatpush1.bf16.msra.mxu0 %v191
  %1812 = vmatprep.subr.bf16.mxu0 %v188
  %1813 = vmatpush1.bf16.msra.mxu0 %v187
  %1814 = vmatprep.subr.bf16.mxu0 %v184
  %1815 = vmatpush1.bf16.msra.mxu0 %v183
  %1816 = vmatprep.subr.bf16.mxu0 %v180
  %1817 = vmatpush1.bf16.msra.mxu0 %v179
  %1818 = vmatprep.subr.bf16.mxu0 %v176
  %1819 = vmatpush1.bf16.msra.mxu0 %v175
  %1820 = vmatprep.subr.bf16.mxu0 %v172
  %1821 = vmatpush1.bf16.msra.mxu0 %v171
  %1822 = vmatprep.subr.bf16.mxu0 %v168
  %1823 = vmatpush1.bf16.msra.mxu0 %v167
  %1824 = vmatprep.subr.bf16.mxu0 0
  %1825 = vmatpush2.bf16.msra.mxu0 0
  %1826 = vmatprep.subr.bf16.mxu0 0
  %1827 = vmatpush2.bf16.msra.mxu0 0
  %1828 = vmatprep.subr.bf16.mxu0 0
  %1829 = vmatpush2.bf16.msra.mxu0 0
  %1830 = vmatprep.subr.bf16.mxu0 0
  %1831 = vmatpush2.bf16.msra.mxu0 0
  %1832 = vmatprep.subr.bf16.mxu0 0
  %1833 = vmatpush2.bf16.msra.mxu0 0
  %1834 = vmatprep.subr.bf16.mxu0 0
  %1835 = vmatpush2.bf16.msra.mxu0 0
  %1836 = vmatprep.subr.bf16.mxu0 0
  %1837 = vmatpush2.bf16.msra.mxu0 0
  %1838 = vmatprep.subr.bf16.mxu0 0
  %1839 = vmatpush2.bf16.msra.mxu0 0
  %1840 = vmatprep.mubr.bf16.mxu0 0
  %1841 = vmatmul.mubr.bf16.gmra.mxu0 %v1766
  %v1842 = vpop.f32.mrf.mxu0
  %v1843 = vadd.f32 0.0, %v1842
  %v1844 = vpop.f32.mrf.mxu0
  %v1845 = vadd.f32 0.0, %v1844
  %v1846 = vpop.f32.mrf.mxu0
  %v1847 = vpop.f32.mrf.mxu0
  %1848 = vdwg.mxu0
  %v1850 = vsel %vm311, %v1765, 0
  %1852 = vmatprep.subr.mxu0 0.0
  %1853 = vmatpush1.msra.mxu0 0.0
  %1854 = vmatprep.subr.mxu0 0.0
  %1855 = vmatpush1.msra.mxu0 0.0
  %1856 = vmatprep.subr.mxu0 0.0
  %1857 = vmatpush1.msra.mxu0 0.0
  %1858 = vmatprep.subr.mxu0 0.0
  %1859 = vmatpush1.msra.mxu0 0.0
  %1860 = vmatprep.subr.mxu0 0.0
  %1861 = vmatpush1.msra.mxu0 0.0
  %1862 = vmatprep.subr.mxu0 0.0
  %1863 = vmatpush1.msra.mxu0 0.0
  %1864 = vmatprep.subr.mxu0 0.0
  %1865 = vmatpush1.msra.mxu0 0.0
  %1866 = vmatprep.subr.mxu0 0.0
  %1867 = vmatpush1.msra.mxu0 0.0
  %1868 = vmatprep.subr.mxu0 0.0
  %1869 = vmatpush1.msra.mxu0 0.0
  %1870 = vmatprep.subr.mxu0 0.0
  %1871 = vmatpush1.msra.mxu0 0.0
  %1872 = vmatprep.subr.mxu0 0.0
  %1873 = vmatpush1.msra.mxu0 0.0
  %1874 = vmatprep.subr.mxu0 0.0
  %1875 = vmatpush1.msra.mxu0 0.0
  %1876 = vmatprep.subr.mxu0 0.0
  %1877 = vmatpush1.msra.mxu0 0.0
  %1878 = vmatprep.subr.mxu0 %v320
  %1879 = vmatpush1.msra.mxu0 %v317
  %1880 = vmatprep.subr.mxu0 %v26
  %1881 = vmatpush1.msra.mxu0 %v25
  %1882 = vmatprep.subr.mxu0 %v22
  %1883 = vmatpush1.msra.mxu0 %v21
  %1884 = vmatprep.subr.mxu0 0.0
  %1885 = vmatpush2.msra.mxu0 0.0
  %1886 = vmatprep.subr.mxu0 0.0
  %1887 = vmatpush2.msra.mxu0 0.0
  %1888 = vmatprep.subr.mxu0 0.0
  %1889 = vmatpush2.msra.mxu0 0.0
  %1890 = vmatprep.subr.mxu0 0.0
  %1891 = vmatpush2.msra.mxu0 0.0
  %1892 = vmatprep.subr.mxu0 0.0
  %1893 = vmatpush2.msra.mxu0 0.0
  %1894 = vmatprep.subr.mxu0 0.0
  %1895 = vmatpush2.msra.mxu0 0.0
  %1896 = vmatprep.subr.mxu0 0.0
  %1897 = vmatpush2.msra.mxu0 0.0
  %1898 = vmatprep.subr.mxu0 0.0
  %1899 = vmatpush2.msra.mxu0 0.0
  %1900 = vmatprep.subr.mxu0 0.0
  %1901 = vmatpush2.msra.mxu0 0.0
  %1902 = vmatprep.subr.mxu0 0.0
  %1903 = vmatpush2.msra.mxu0 0.0
  %1904 = vmatprep.subr.mxu0 0.0
  %1905 = vmatpush2.msra.mxu0 0.0
  %1906 = vmatprep.subr.mxu0 0.0
  %1907 = vmatpush2.msra.mxu0 0.0
  %1908 = vmatprep.subr.mxu0 0.0
  %1909 = vmatpush2.msra.mxu0 0.0
  %1910 = vmatprep.subr.mxu0 0.0
  %1911 = vmatpush2.msra.mxu0 0.0
  %1912 = vmatprep.subr.mxu0 0.0
  %1913 = vmatpush2.msra.mxu0 0.0
  %1914 = vmatprep.subr.mxu0 0.0
  %1915 = vmatpush2.msra.mxu0 0.0
  %1916 = vmatprep.mubr.f32.mxu0 0.0
  %1917 = vmatmul.mubr.f32.gmra.mxu0 %v1850
  %v1918 = vpop.f32.mrf.mxu0
  %v1919 = vadd.f32 %v1802, %v1918
  %v1920 = vpop.f32.mrf.mxu0
  %v1921 = vadd.f32 %v1804, %v1920
  %1922 = vdwg.mxu0
  %1923 = vmatprep.subr.mxu0 0.0
  %1924 = vmatpush1.msra.mxu0 0.0
  %1925 = vmatprep.subr.mxu0 0.0
  %1926 = vmatpush1.msra.mxu0 0.0
  %1927 = vmatprep.subr.mxu0 0.0
  %1928 = vmatpush1.msra.mxu0 0.0
  %1929 = vmatprep.subr.mxu0 0.0
  %1930 = vmatpush1.msra.mxu0 0.0
  %1931 = vmatprep.subr.mxu0 0.0
  %1932 = vmatpush1.msra.mxu0 0.0
  %1933 = vmatprep.subr.mxu0 0.0
  %1934 = vmatpush1.msra.mxu0 0.0
  %1935 = vmatprep.subr.mxu0 0.0
  %1936 = vmatpush1.msra.mxu0 0.0
  %1937 = vmatprep.subr.mxu0 0.0
  %1938 = vmatpush1.msra.mxu0 0.0
  %1939 = vmatprep.subr.mxu0 0.0
  %1940 = vmatpush1.msra.mxu0 0.0
  %1941 = vmatprep.subr.mxu0 0.0
  %1942 = vmatpush1.msra.mxu0 0.0
  %1943 = vmatprep.subr.mxu0 0.0
  %1944 = vmatpush1.msra.mxu0 0.0
  %1945 = vmatprep.subr.mxu0 0.0
  %1946 = vmatpush1.msra.mxu0 0.0
  %1947 = vmatprep.subr.mxu0 0.0
  %1948 = vmatpush1.msra.mxu0 0.0
  %1949 = vmatprep.subr.mxu0 %v326
  %1950 = vmatpush1.msra.mxu0 %v323
  %1951 = vmatprep.subr.mxu0 %v28
  %1952 = vmatpush1.msra.mxu0 %v27
  %1953 = vmatprep.subr.mxu0 %v24
  %1954 = vmatpush1.msra.mxu0 %v23
  %1955 = vmatprep.subr.mxu0 0.0
  %1956 = vmatpush2.msra.mxu0 0.0
  %1957 = vmatprep.subr.mxu0 0.0
  %1958 = vmatpush2.msra.mxu0 0.0
  %1959 = vmatprep.subr.mxu0 0.0
  %1960 = vmatpush2.msra.mxu0 0.0
  %1961 = vmatprep.subr.mxu0 0.0
  %1962 = vmatpush2.msra.mxu0 0.0
  %1963 = vmatprep.subr.mxu0 0.0
  %1964 = vmatpush2.msra.mxu0 0.0
  %1965 = vmatprep.subr.mxu0 0.0
  %1966 = vmatpush2.msra.mxu0 0.0
  %1967 = vmatprep.subr.mxu0 0.0
  %1968 = vmatpush2.msra.mxu0 0.0
  %1969 = vmatprep.subr.mxu0 0.0
  %1970 = vmatpush2.msra.mxu0 0.0
  %1971 = vmatprep.subr.mxu0 0.0
  %1972 = vmatpush2.msra.mxu0 0.0
  %1973 = vmatprep.subr.mxu0 0.0
  %1974 = vmatpush2.msra.mxu0 0.0
  %1975 = vmatprep.subr.mxu0 0.0
  %1976 = vmatpush2.msra.mxu0 0.0
  %1977 = vmatprep.subr.mxu0 0.0
  %1978 = vmatpush2.msra.mxu0 0.0
  %1979 = vmatprep.subr.mxu0 0.0
  %1980 = vmatpush2.msra.mxu0 0.0
  %1981 = vmatprep.subr.mxu0 0.0
  %1982 = vmatpush2.msra.mxu0 0.0
  %1983 = vmatprep.subr.mxu0 0.0
  %1984 = vmatpush2.msra.mxu0 0.0
  %1985 = vmatprep.subr.mxu0 0.0
  %1986 = vmatpush2.msra.mxu0 0.0
  %1987 = vmatprep.mubr.f32.mxu0 0.0
  %1988 = vmatmul.mubr.f32.gmra.mxu0 %v1850
  %v1989 = vpop.f32.mrf.mxu0
  %v1990 = vadd.f32 %v1843, %v1989
  %v1991 = vpop.f32.mrf.mxu0
  %v1992 = vadd.f32 %v1845, %v1991
  %1993 = vdwg.mxu0
  %v1994 = vxor.u32 %v1919, 2147483648
  %v1995 = vxor.u32 %v1921, 2147483648
  %v1996 = vxor.u32 %v1990, 2147483648
  %v1997 = vmul.f32 %v1994, 1.442695
  %v1998 = vpow.pop %v1997
  %v1999 = vmul.f32 %v1995, 1.442695
  %v2000 = vpow.pop %v1999
  %v2001 = vmul.f32 %v1996, 1.442695
  %v2002 = vpow.pop %v2001
  %v2003 = vadd.f32 %v1998, 1.0
  %v2004 = vadd.f32 %v2000, 1.0
  %v2005 = vadd.f32 %v2002, 1.0
  %v2006 = vrcp.pop %v2003
  %v2007 = vmul.f32 1.0, %v2006
  %v2008 = vrcp.pop %v2004
  %v2009 = vmul.f32 1.0, %v2008
  %v2010 = vrcp.pop %v2005
  %v2011 = vmul.f32 1.0, %v2010
  %v2012 = vtanh.pop %v1992
  %v2013 = vmul.f32 %v2009, %v1761
  %v2014 = vmul.f32 %v2007, %v2012
  %v2015 = vadd.f32 %v2013, %v2014
  %v2016 = vtanh.pop %v2015
  %v2017 = vmul.f32 %v2011, %v2016
  %s2018 = scalar_lea.vmem %s0, 56
  %v2019 = vld [vmem:[%s2018] sm:$0xff]
  %v2020 = vpack.c.bf16 %v2017, %v2017
  %2021 = vmatprep.subr.bf16.mxu0 %v194
  %2022 = vmatpush1.bf16.msra.mxu0 %v193
  %2023 = vmatprep.subr.bf16.mxu0 %v190
  %2024 = vmatpush1.bf16.msra.mxu0 %v189
  %2025 = vmatprep.subr.bf16.mxu0 %v186
  %2026 = vmatpush1.bf16.msra.mxu0 %v185
  %2027 = vmatprep.subr.bf16.mxu0 %v182
  %2028 = vmatpush1.bf16.msra.mxu0 %v181
  %2029 = vmatprep.subr.bf16.mxu0 %v178
  %2030 = vmatpush1.bf16.msra.mxu0 %v177
  %2031 = vmatprep.subr.bf16.mxu0 %v174
  %2032 = vmatpush1.bf16.msra.mxu0 %v173
  %2033 = vmatprep.subr.bf16.mxu0 %v170
  %2034 = vmatpush1.bf16.msra.mxu0 %v169
  %2035 = vmatprep.subr.bf16.mxu0 %v166
  %2036 = vmatpush1.bf16.msra.mxu0 %v165
  %2037 = vmatprep.subr.bf16.mxu0 0
  %2038 = vmatpush2.bf16.msra.mxu0 0
  %2039 = vmatprep.subr.bf16.mxu0 0
  %2040 = vmatpush2.bf16.msra.mxu0 0
  %2041 = vmatprep.subr.bf16.mxu0 0
  %2042 = vmatpush2.bf16.msra.mxu0 0
  %2043 = vmatprep.subr.bf16.mxu0 0
  %2044 = vmatpush2.bf16.msra.mxu0 0
  %2045 = vmatprep.subr.bf16.mxu0 0
  %2046 = vmatpush2.bf16.msra.mxu0 0
  %2047 = vmatprep.subr.bf16.mxu0 0
  %2048 = vmatpush2.bf16.msra.mxu0 0
  %2049 = vmatprep.subr.bf16.mxu0 0
  %2050 = vmatpush2.bf16.msra.mxu0 0
  %2051 = vmatprep.subr.bf16.mxu0 0
  %2052 = vmatpush2.bf16.msra.mxu0 0
  %2053 = vmatprep.mubr.bf16.mxu0 0
  %2054 = vmatmul.mubr.bf16.gmra.mxu0 %v2020
  %v2055 = vpop.f32.mrf.mxu0
  %v2056 = vadd.f32 0.0, %v2055
  %v2057 = vpop.f32.mrf.mxu0
  %v2058 = vadd.f32 0.0, %v2057
  %v2059 = vpop.f32.mrf.mxu0
  %v2060 = vpop.f32.mrf.mxu0
  %2061 = vdwg.mxu0
  %2062 = vmatprep.subr.bf16.mxu0 %v196
  %2063 = vmatpush1.bf16.msra.mxu0 %v195
  %2064 = vmatprep.subr.bf16.mxu0 %v192
  %2065 = vmatpush1.bf16.msra.mxu0 %v191
  %2066 = vmatprep.subr.bf16.mxu0 %v188
  %2067 = vmatpush1.bf16.msra.mxu0 %v187
  %2068 = vmatprep.subr.bf16.mxu0 %v184
  %2069 = vmatpush1.bf16.msra.mxu0 %v183
  %2070 = vmatprep.subr.bf16.mxu0 %v180
  %2071 = vmatpush1.bf16.msra.mxu0 %v179
  %2072 = vmatprep.subr.bf16.mxu0 %v176
  %2073 = vmatpush1.bf16.msra.mxu0 %v175
  %2074 = vmatprep.subr.bf16.mxu0 %v172
  %2075 = vmatpush1.bf16.msra.mxu0 %v171
  %2076 = vmatprep.subr.bf16.mxu0 %v168
  %2077 = vmatpush1.bf16.msra.mxu0 %v167
  %2078 = vmatprep.subr.bf16.mxu0 0
  %2079 = vmatpush2.bf16.msra.mxu0 0
  %2080 = vmatprep.subr.bf16.mxu0 0
  %2081 = vmatpush2.bf16.msra.mxu0 0
  %2082 = vmatprep.subr.bf16.mxu0 0
  %2083 = vmatpush2.bf16.msra.mxu0 0
  %2084 = vmatprep.subr.bf16.mxu0 0
  %2085 = vmatpush2.bf16.msra.mxu0 0
  %2086 = vmatprep.subr.bf16.mxu0 0
  %2087 = vmatpush2.bf16.msra.mxu0 0
  %2088 = vmatprep.subr.bf16.mxu0 0
  %2089 = vmatpush2.bf16.msra.mxu0 0
  %2090 = vmatprep.subr.bf16.mxu0 0
  %2091 = vmatpush2.bf16.msra.mxu0 0
  %2092 = vmatprep.subr.bf16.mxu0 0
  %2093 = vmatpush2.bf16.msra.mxu0 0
  %2094 = vmatprep.mubr.bf16.mxu0 0
  %2095 = vmatmul.mubr.bf16.gmra.mxu0 %v2020
  %v2096 = vpop.f32.mrf.mxu0
  %v2097 = vadd.f32 0.0, %v2096
  %v2098 = vpop.f32.mrf.mxu0
  %v2099 = vadd.f32 0.0, %v2098
  %v2100 = vpop.f32.mrf.mxu0
  %v2101 = vpop.f32.mrf.mxu0
  %2102 = vdwg.mxu0
  %v2104 = vsel %vm311, %v2019, 0
  %2106 = vmatprep.subr.mxu0 0.0
  %2107 = vmatpush1.msra.mxu0 0.0
  %2108 = vmatprep.subr.mxu0 0.0
  %2109 = vmatpush1.msra.mxu0 0.0
  %2110 = vmatprep.subr.mxu0 0.0
  %2111 = vmatpush1.msra.mxu0 0.0
  %2112 = vmatprep.subr.mxu0 0.0
  %2113 = vmatpush1.msra.mxu0 0.0
  %2114 = vmatprep.subr.mxu0 0.0
  %2115 = vmatpush1.msra.mxu0 0.0
  %2116 = vmatprep.subr.mxu0 0.0
  %2117 = vmatpush1.msra.mxu0 0.0
  %2118 = vmatprep.subr.mxu0 0.0
  %2119 = vmatpush1.msra.mxu0 0.0
  %2120 = vmatprep.subr.mxu0 0.0
  %2121 = vmatpush1.msra.mxu0 0.0
  %2122 = vmatprep.subr.mxu0 0.0
  %2123 = vmatpush1.msra.mxu0 0.0
  %2124 = vmatprep.subr.mxu0 0.0
  %2125 = vmatpush1.msra.mxu0 0.0
  %2126 = vmatprep.subr.mxu0 0.0
  %2127 = vmatpush1.msra.mxu0 0.0
  %2128 = vmatprep.subr.mxu0 0.0
  %2129 = vmatpush1.msra.mxu0 0.0
  %2130 = vmatprep.subr.mxu0 0.0
  %2131 = vmatpush1.msra.mxu0 0.0
  %2132 = vmatprep.subr.mxu0 %v320
  %2133 = vmatpush1.msra.mxu0 %v317
  %2134 = vmatprep.subr.mxu0 %v26
  %2135 = vmatpush1.msra.mxu0 %v25
  %2136 = vmatprep.subr.mxu0 %v22
  %2137 = vmatpush1.msra.mxu0 %v21
  %2138 = vmatprep.subr.mxu0 0.0
  %2139 = vmatpush2.msra.mxu0 0.0
  %2140 = vmatprep.subr.mxu0 0.0
  %2141 = vmatpush2.msra.mxu0 0.0
  %2142 = vmatprep.subr.mxu0 0.0
  %2143 = vmatpush2.msra.mxu0 0.0
  %2144 = vmatprep.subr.mxu0 0.0
  %2145 = vmatpush2.msra.mxu0 0.0
  %2146 = vmatprep.subr.mxu0 0.0
  %2147 = vmatpush2.msra.mxu0 0.0
  %2148 = vmatprep.subr.mxu0 0.0
  %2149 = vmatpush2.msra.mxu0 0.0
  %2150 = vmatprep.subr.mxu0 0.0
  %2151 = vmatpush2.msra.mxu0 0.0
  %2152 = vmatprep.subr.mxu0 0.0
  %2153 = vmatpush2.msra.mxu0 0.0
  %2154 = vmatprep.subr.mxu0 0.0
  %2155 = vmatpush2.msra.mxu0 0.0
  %2156 = vmatprep.subr.mxu0 0.0
  %2157 = vmatpush2.msra.mxu0 0.0
  %2158 = vmatprep.subr.mxu0 0.0
  %2159 = vmatpush2.msra.mxu0 0.0
  %2160 = vmatprep.subr.mxu0 0.0
  %2161 = vmatpush2.msra.mxu0 0.0
  %2162 = vmatprep.subr.mxu0 0.0
  %2163 = vmatpush2.msra.mxu0 0.0
  %2164 = vmatprep.subr.mxu0 0.0
  %2165 = vmatpush2.msra.mxu0 0.0
  %2166 = vmatprep.subr.mxu0 0.0
  %2167 = vmatpush2.msra.mxu0 0.0
  %2168 = vmatprep.subr.mxu0 0.0
  %2169 = vmatpush2.msra.mxu0 0.0
  %2170 = vmatprep.mubr.f32.mxu0 0.0
  %2171 = vmatmul.mubr.f32.gmra.mxu0 %v2104
  %v2172 = vpop.f32.mrf.mxu0
  %v2173 = vadd.f32 %v2056, %v2172
  %v2174 = vpop.f32.mrf.mxu0
  %v2175 = vadd.f32 %v2058, %v2174
  %2176 = vdwg.mxu0
  %2177 = vmatprep.subr.mxu0 0.0
  %2178 = vmatpush1.msra.mxu0 0.0
  %2179 = vmatprep.subr.mxu0 0.0
  %2180 = vmatpush1.msra.mxu0 0.0
  %2181 = vmatprep.subr.mxu0 0.0
  %2182 = vmatpush1.msra.mxu0 0.0
  %2183 = vmatprep.subr.mxu0 0.0
  %2184 = vmatpush1.msra.mxu0 0.0
  %2185 = vmatprep.subr.mxu0 0.0
  %2186 = vmatpush1.msra.mxu0 0.0
  %2187 = vmatprep.subr.mxu0 0.0
  %2188 = vmatpush1.msra.mxu0 0.0
  %2189 = vmatprep.subr.mxu0 0.0
  %2190 = vmatpush1.msra.mxu0 0.0
  %2191 = vmatprep.subr.mxu0 0.0
  %2192 = vmatpush1.msra.mxu0 0.0
  %2193 = vmatprep.subr.mxu0 0.0
  %2194 = vmatpush1.msra.mxu0 0.0
  %2195 = vmatprep.subr.mxu0 0.0
  %2196 = vmatpush1.msra.mxu0 0.0
  %2197 = vmatprep.subr.mxu0 0.0
  %2198 = vmatpush1.msra.mxu0 0.0
  %2199 = vmatprep.subr.mxu0 0.0
  %2200 = vmatpush1.msra.mxu0 0.0
  %2201 = vmatprep.subr.mxu0 0.0
  %2202 = vmatpush1.msra.mxu0 0.0
  %2203 = vmatprep.subr.mxu0 %v326
  %2204 = vmatpush1.msra.mxu0 %v323
  %2205 = vmatprep.subr.mxu0 %v28
  %2206 = vmatpush1.msra.mxu0 %v27
  %2207 = vmatprep.subr.mxu0 %v24
  %2208 = vmatpush1.msra.mxu0 %v23
  %2209 = vmatprep.subr.mxu0 0.0
  %2210 = vmatpush2.msra.mxu0 0.0
  %2211 = vmatprep.subr.mxu0 0.0
  %2212 = vmatpush2.msra.mxu0 0.0
  %2213 = vmatprep.subr.mxu0 0.0
  %2214 = vmatpush2.msra.mxu0 0.0
  %2215 = vmatprep.subr.mxu0 0.0
  %2216 = vmatpush2.msra.mxu0 0.0
  %2217 = vmatprep.subr.mxu0 0.0
  %2218 = vmatpush2.msra.mxu0 0.0
  %2219 = vmatprep.subr.mxu0 0.0
  %2220 = vmatpush2.msra.mxu0 0.0
  %2221 = vmatprep.subr.mxu0 0.0
  %2222 = vmatpush2.msra.mxu0 0.0
  %2223 = vmatprep.subr.mxu0 0.0
  %2224 = vmatpush2.msra.mxu0 0.0
  %2225 = vmatprep.subr.mxu0 0.0
  %2226 = vmatpush2.msra.mxu0 0.0
  %2227 = vmatprep.subr.mxu0 0.0
  %2228 = vmatpush2.msra.mxu0 0.0
  %2229 = vmatprep.subr.mxu0 0.0
  %2230 = vmatpush2.msra.mxu0 0.0
  %2231 = vmatprep.subr.mxu0 0.0
  %2232 = vmatpush2.msra.mxu0 0.0
  %2233 = vmatprep.subr.mxu0 0.0
  %2234 = vmatpush2.msra.mxu0 0.0
  %2235 = vmatprep.subr.mxu0 0.0
  %2236 = vmatpush2.msra.mxu0 0.0
  %2237 = vmatprep.subr.mxu0 0.0
  %2238 = vmatpush2.msra.mxu0 0.0
  %2239 = vmatprep.subr.mxu0 0.0
  %2240 = vmatpush2.msra.mxu0 0.0
  %2241 = vmatprep.mubr.f32.mxu0 0.0
  %2242 = vmatmul.mubr.f32.gmra.mxu0 %v2104
  %v2243 = vpop.f32.mrf.mxu0
  %v2244 = vadd.f32 %v2097, %v2243
  %v2245 = vpop.f32.mrf.mxu0
  %v2246 = vadd.f32 %v2099, %v2245
  %2247 = vdwg.mxu0
  %v2248 = vxor.u32 %v2173, 2147483648
  %v2249 = vxor.u32 %v2175, 2147483648
  %v2250 = vxor.u32 %v2244, 2147483648
  %v2251 = vmul.f32 %v2248, 1.442695
  %v2252 = vpow.pop %v2251
  %v2253 = vmul.f32 %v2249, 1.442695
  %v2254 = vpow.pop %v2253
  %v2255 = vmul.f32 %v2250, 1.442695
  %v2256 = vpow.pop %v2255
  %v2257 = vadd.f32 %v2252, 1.0
  %v2258 = vadd.f32 %v2254, 1.0
  %v2259 = vadd.f32 %v2256, 1.0
  %v2260 = vrcp.pop %v2257
  %v2261 = vmul.f32 1.0, %v2260
  %v2262 = vrcp.pop %v2258
  %v2263 = vmul.f32 1.0, %v2262
  %v2264 = vrcp.pop %v2259
  %v2265 = vmul.f32 1.0, %v2264
  %v2266 = vtanh.pop %v2246
  %v2267 = vmul.f32 %v2263, %v2015
  %v2268 = vmul.f32 %v2261, %v2266
  %v2269 = vadd.f32 %v2267, %v2268
  %v2270 = vtanh.pop %v2269
  %v2271 = vmul.f32 %v2265, %v2270
  %2272 = vst [vmem:[#allocation2] sm:$0xff] %v2271
  %2273 = vst [vmem:[#allocation3] sm:$0xff] %v2269
  // Predicated region
  $region18: #{custom_lstm_forward.1} parent=0 // pred_check
    %p2274 = pneg %p15
  $region19: #{custom_lstm_forward.1} parent=0 // pred_check_branch
    %2276 = sbr.rel (%p2274) target = $region21
  $region20: #{custom_lstm_forward.1} parent=0 // pred_region
    %2277 = vst [vmem:[%s3] sm:$0xff] %v2271
  $region21: #{custom_lstm_forward.1} parent=0 // pred_fallthru
    _
  // Predicated region
  $region22: #{custom_lstm_forward.1} parent=0 // pred_check
    _
  $region23: #{custom_lstm_forward.1} parent=0 // pred_check_branch
    %2279 = sbr.rel (0) target = $region25
  $region24: #{custom_lstm_forward.1} parent=0 // pred_region
    _
  $region25: #{custom_lstm_forward.1} parent=0 // pred_fallthru
    _
  // Predicated region
  $region26: #{custom_lstm_forward.1} parent=0 // pred_check
    _
  $region27: #{custom_lstm_forward.1} parent=0 // pred_check_branch
    %2281 = sbr.rel (0) target = $region29
  $region28: #{custom_lstm_forward.1} parent=0 // pred_region
    _
  $region29: #{custom_lstm_forward.1} parent=0 // pred_fallthru
    _

</llo_original>
